<compile_context>
chip_gen: v7x
topology: tpu7x:2x2x1
jax: 0.10.0
libtpu: 0.0.40
codegen_flags: <defaults>
</compile_context>

<pallas_src>
import functools

import jax
import jax.numpy as jnp
from jax import lax
from jax.experimental import pallas as pl
from jax.experimental.pallas import tpu as pltpu


# --------------------------- fused DownBlock kernel ---------------------------

def _downblock_kernel(xq_ref, w1_ref, w3_ref, b3_ref, w4_ref, w2_ref, w5_ref,
                      b25_ref, o_ref, *, Ho, Wo, Cin, mid):
    f32 = jnp.float32
    xq = xq_ref[...]                                    # (Ho, Wo, 4*Cin) f32, [EE|EO|OE|OO]

    # ---- branch 2 head: conv3 + bn3 + relu on all four parity planes at once
    #      (block-diagonal weight -> one lane-dense MXU matmul).
    tq = jnp.dot(xq.reshape(Ho * Wo, 4 * Cin).astype(jnp.bfloat16), w3_ref[...],
                 preferred_element_type=f32) + b3_ref[...]
    tq = jnp.maximum(tq, 0.0).reshape(Ho, Wo, 4 * mid)  # packed parity planes of t

    def dw3x3_s2(planes, w9, C):
        # Depthwise 3x3 / stride 2 / pad 1 on packed parity planes (Ho, Wo, 4*C).
        # out[y,x,c] = sum_{ky,kx} w9[ky*3+kx, c] * x_pad[2y+ky, 2x+kx, c]; the padding
        # zeros are introduced by the row/col shift helpers below.
        EE = planes[:, :, 0 * C:1 * C]
        EO = planes[:, :, 1 * C:2 * C]
        OE = planes[:, :, 2 * C:3 * C]
        OO = planes[:, :, 3 * C:4 * C]
        wk = lambda k: w9[k:k + 1, :]                   # (1, C) -> broadcasts over (Ho, Wo, C)
        center = EE * wk(4) + EO * wk(5) + OE * wk(7) + OO * wk(8)
        left = EO * wk(3) + OO * wk(6)                  # taps at kx == 0 (need col shift)
        top = OE * wk(1) + OO * wk(2)                   # taps at ky == 0 (need row shift)
        corner = OO * wk(0)                             # tap (0, 0)      (needs both shifts)
        zrow = jnp.zeros((1, Wo, C), f32)
        zcol = jnp.zeros((Ho, 1, C), f32)
        shift_y = lambda a: jnp.concatenate([zrow, a[:-1, :, :]], axis=0)
        shift_x = lambda a: jnp.concatenate([zcol, a[:, :-1, :]], axis=1)
        return center + shift_x(left) + shift_y(top + shift_x(corner))

    # bn scales are already folded into w1/w4; bn1/bn4 biases are folded into b25 downstream.
    d1 = dw3x3_s2(xq, w1_ref[...], Cin)                 # (Ho, Wo, Cin)  branch 1
    d2 = dw3x3_s2(tq, w4_ref[...], mid)                 # (Ho, Wo, mid)  branch 2

    # ---- conv2 || conv5 + bn + relu + ShuffleBlock(groups=2) in one epilogue:
    #      weight columns are pre-interleaved (even = branch 1, odd = branch 2).
    out = (jnp.dot(d1.reshape(Ho * Wo, Cin).astype(jnp.bfloat16), w2_ref[...],
                   preferred_element_type=f32)
           + jnp.dot(d2.reshape(Ho * Wo, mid).astype(jnp.bfloat16), w5_ref[...],
                     preferred_element_type=f32)
           + b25_ref[...])
    o_ref[...] = jnp.maximum(out, 0.0)                  # (Ho*Wo, 2*mid), already shuffled


def downblock_pallas(prepared, xq):
    N, Ho, Wo, _ = xq.shape
    Cin, mid = prepared['Cin'], prepared['mid']
    kernel = functools.partial(_downblock_kernel, Ho=Ho, Wo=Wo, Cin=Cin, mid=mid)

    def full(shape):  # whole-array weight / bias block, identical for every grid step
        return pl.BlockSpec(shape, lambda *_: (0,) * len(shape))

    return pl.pallas_call(
        kernel,
        out_shape=jax.ShapeDtypeStruct((N, Ho * Wo, 2 * mid), jnp.float32),
        grid=(N,),
        in_specs=[pl.BlockSpec((None, Ho, Wo, 4 * Cin), lambda n: (n, 0, 0, 0)),
                  full((9, Cin)),                 # w1 (bn1 scale folded), f32
                  full((4 * Cin, 4 * mid)),       # conv3 block-diagonal, bf16
                  full((1, 4 * mid)),             # bn3 bias (tiled x4), f32
                  full((9, mid)),                 # w4 (bn4 scale folded), f32
                  full((Cin, 2 * mid)),           # conv2, interleaved cols, bf16
                  full((mid, 2 * mid)),           # conv5, interleaved cols, bf16
                  full((1, 2 * mid))],            # fused final bias, f32
        out_specs=pl.BlockSpec((None, Ho * Wo, 2 * mid), lambda n: (n, 0, 0)),
        compiler_params=pltpu.CompilerParams(dimension_semantics=("parallel",)),
    )(xq, prepared['w1'], prepared['w3'], prepared['b3'], prepared['w4'],
      prepared['w2i'], prepared['w5i'], prepared['b25'])


# ----------------------------- parameters & folding -----------------------------

def _he(key, shape, fan_in):
    return jax.random.normal(key, shape, jnp.float32) * jnp.sqrt(2.0 / fan_in)


def _bn_params(c):
    return dict(gamma=jnp.ones((c,), jnp.float32), beta=jnp.zeros((c,), jnp.float32),
                mean=jnp.zeros((c,), jnp.float32), var=jnp.ones((c,), jnp.float32))


def _fold_bn(bn, eps=1e-5):
    # TODO(synk): PyTorch BatchNorm2d in train() mode uses batch statistics; this folds
    # inference (running-stat) semantics into a per-channel scale/bias.
    scale = bn['gamma'] / jnp.sqrt(bn['var'] + eps)
    return scale, bn['beta'] - bn['mean'] * scale


def init_downblock(key, in_channels, out_channels):
    mid = out_channels // 2
    ks = jax.random.split(key, 5)
    return dict(
        conv1_w=_he(ks[0], (9, in_channels), 9),              # depthwise 3x3 taps (ky*3+kx, c)
        bn1=_bn_params(in_channels),
        conv2_w=_he(ks[1], (in_channels, mid), in_channels),  # 1x1: (Cin, Cout)
        bn2=_bn_params(mid),
        conv3_w=_he(ks[2], (in_channels, mid), in_channels),
        bn3=_bn_params(mid),
        conv4_w=_he(ks[3], (9, mid), 9),
        bn4=_bn_params(mid),
        conv5_w=_he(ks[4], (mid, mid), mid),
        bn5=_bn_params(mid),
    )


def prepare_downblock(params):
    """Fold BN into weights/biases, build the fused (block-diag / interleaved) weights,
    and pre-cast MXU weights to bf16.  Runs once, outside the kernel."""
    s1, b1 = _fold_bn(params['bn1'])
    s2, b2 = _fold_bn(params['bn2'])
    s3, b3 = _fold_bn(params['bn3'])
    s4, b4 = _fold_bn(params['bn4'])
    s5, b5 = _fold_bn(params['bn5'])
    Cin = params['conv1_w'].shape[1]
    mid = params['conv2_w'].shape[1]

    w1 = params['conv1_w'] * s1[None, :]                      # (9, Cin)
    w4 = params['conv4_w'] * s4[None, :]                      # (9, mid)
    w3 = params['conv3_w'] * s3[None, :]                      # (Cin, mid)
    w2 = params['conv2_w'] * s2[None, :]                      # (Cin, mid)
    w5 = params['conv5_w'] * s5[None, :]                      # (mid, mid)

    # conv3 applied to the 4 packed parity planes at once -> block-diagonal weight.
    w3_blk = jnp.kron(jnp.eye(4, dtype=jnp.float32), w3)      # (4*Cin, 4*mid)
    b3_rep = jnp.tile(b3, 4).reshape(1, 4 * mid)

    # conv2 / conv5 with channel-shuffled (interleaved) output columns:
    # shuffled channel 2i <- branch1 channel i, 2i+1 <- branch2 channel i.
    w2i = jnp.zeros((Cin, 2 * mid), jnp.float32).at[:, 0::2].set(w2)
    w5i = jnp.zeros((mid, 2 * mid), jnp.float32).at[:, 1::2].set(w5)
    b25 = jnp.zeros((2 * mid,), jnp.float32).at[0::2].set(b2).at[1::2].set(b5)
    # bn1 / bn4 biases are per-channel constants -> fold them through conv2 / conv5.
    b25 = b25 + b1 @ w2i + b4 @ w5i

    return dict(Cin=Cin, mid=mid,
                w1=w1, w4=w4,
                w3=w3_blk.astype(jnp.bfloat16), b3=b3_rep,
                w2i=w2i.astype(jnp.bfloat16), w5i=w5i.astype(jnp.bfloat16),
                b25=b25.reshape(1, 2 * mid))


# ----------------------------- forward pass -----------------------------

def downblock_forward(prepared, x_nchw):
    x = jnp.transpose(x_nchw, (0, 2, 3, 1)).astype(jnp.float32)      # NCHW -> NHWC
    N, H, W, _ = x.shape
    assert H % 2 == 0 and W % 2 == 0, "DownBlock halves spatial dims; H, W must be even"
    Ho, Wo = H // 2, W // 2
    # Pack the four stride-2 parity planes along channels: [EE|EO|OE|OO] (lane-dense input).
    # TODO(synk): this split could be folded into the kernel DMA with strided index maps.
    xq = jnp.concatenate([x[:, 0::2, 0::2, :], x[:, 0::2, 1::2, :],
                          x[:, 1::2, 0::2, :], x[:, 1::2, 1::2, :]], axis=-1)
    out = downblock_pallas(prepared, xq)                              # (N, Ho*Wo, 2*mid)
    out = out.reshape(N, Ho, Wo, 2 * prepared['mid'])
    return jnp.transpose(out, (0, 3, 1, 2))                           # NHWC -> NCHW


# ----------------------------- pure-JAX reference -----------------------------

def downblock_reference(params, x, eps=1e-5):
    """Pure-JAX NCHW mirror of the PyTorch DownBlock (inference-mode BN)."""
    def bn(v, p):
        s = p['gamma'] / jnp.sqrt(p['var'] + eps)
        b = p['beta'] - p['mean'] * s
        return v * s[None, :, None, None] + b[None, :, None, None]

    def c1x1(v, w):                                       # w: (Cin, Cout)
        return lax.conv_general_dilated(v, jnp.transpose(w)[:, :, None, None],
                                        (1, 1), 'VALID',
                                        dimension_numbers=('NCHW', 'OIHW', 'NCHW'))

    def dw3x3(v, w9):                                     # w9: (9, C), taps ky*3+kx
        C = w9.shape[1]
        k = jnp.transpose(w9).reshape(C, 1, 3, 3)
        return lax.conv_general_dilated(v, k, (2, 2), ((1, 1), (1, 1)),
                                        dimension_numbers=('NCHW', 'OIHW', 'NCHW'),
                                        feature_group_count=C)

    out1 = bn(dw3x3(x, params['conv1_w']), params['bn1'])
    out1 = jax.nn.relu(bn(c1x1(out1, params['conv2_w']), params['bn2']))
    out2 = jax.nn.relu(bn(c1x1(x, params['conv3_w']), params['bn3']))
    out2 = bn(dw3x3(out2, params['conv4_w']), params['bn4'])
    out2 = jax.nn.relu(bn(c1x1(out2, params['conv5_w']), params['bn5']))
    out = jnp.concatenate([out1, out2], axis=1)
    N, C, H, W = out.shape
    return out.reshape(N, 2, C // 2, H, W).transpose(0, 2, 1, 3, 4).reshape(N, C, H, W)


# --------------------------------- main ---------------------------------

if __name__ == "__main__":
    key = jax.random.PRNGKey(0)
    pkey, xkey = jax.random.split(key)
    in_channels, out_channels = 32, 64              # mid_channels = 32
    params = init_downblock(pkey, in_channels, out_channels)
    prepared = prepare_downblock(params)

    # PyTorch-style NCHW input: batch=2, 32 channels, 16x16 spatial
    x = jax.random.normal(xkey, (2, in_channels, 16, 16), jnp.float32)

    fwd = jax.jit(lambda inp: downblock_forward(prepared, inp))
    out = fwd(x)
    jax.block_until_ready(out)
    assert out.shape == (2, out_channels, 8, 8) and out.dtype == jnp.float32

    # Correctness vs a pure-JAX (XLA) reference; tolerance accounts for bf16 MXU inputs.
    ref = downblock_reference(params, x)
    err = float(jnp.max(jnp.abs(out - ref)) / (jnp.max(jnp.abs(ref)) + 1e-6))
    assert err < 5e-2, f"mismatch vs reference: normalized max error = {err}"
    print("KERNEL_OK")
</pallas_src>

<mosaic_0001>
module attributes {stable_mosaic.version = 11 : i64} {
  func.func @_downblock_kernel(%arg0: i32, %arg1: memref<1x8x8x128xf32, #tpu.memory_space<vmem>>, %arg2: memref<9x32xf32, #tpu.memory_space<vmem>>, %arg3: memref<128x128xbf16, #tpu.memory_space<vmem>>, %arg4: memref<1x128xf32, #tpu.memory_space<vmem>>, %arg5: memref<9x32xf32, #tpu.memory_space<vmem>>, %arg6: memref<32x64xbf16, #tpu.memory_space<vmem>>, %arg7: memref<32x64xbf16, #tpu.memory_space<vmem>>, %arg8: memref<1x64xf32, #tpu.memory_space<vmem>>, %arg9: memref<1x64x64xf32, #tpu.memory_space<vmem>>) attributes {dimension_semantics = [#tpu.dimension_semantics<parallel>], iteration_bounds = array<i64: 2>, scalar_prefetch = 0 : i64, scratch_operands = 0 : i64, tpu.core_type = #tpu.core_type<tc>, window_params = [{transform_indices = @transform_0, window_bounds = array<i64: 1, 8, 8, 128>}, {pipeline_mode = #tpu.pipeline_mode<synchronous>, transform_indices = @transform_1, window_bounds = array<i64: 9, 32>}, {pipeline_mode = #tpu.pipeline_mode<synchronous>, transform_indices = @transform_2, window_bounds = array<i64: 128, 128>}, {pipeline_mode = #tpu.pipeline_mode<synchronous>, transform_indices = @transform_3, window_bounds = array<i64: 1, 128>}, {pipeline_mode = #tpu.pipeline_mode<synchronous>, transform_indices = @transform_4, window_bounds = array<i64: 9, 32>}, {pipeline_mode = #tpu.pipeline_mode<synchronous>, transform_indices = @transform_5, window_bounds = array<i64: 32, 64>}, {pipeline_mode = #tpu.pipeline_mode<synchronous>, transform_indices = @transform_6, window_bounds = array<i64: 32, 64>}, {pipeline_mode = #tpu.pipeline_mode<synchronous>, transform_indices = @transform_7, window_bounds = array<i64: 1, 64>}, {transform_indices = @transform_8, window_bounds = array<i64: 1, 64, 64>}]} {
    %c0 = arith.constant 0 : index
    %c0_0 = arith.constant 0 : index
    %c0_1 = arith.constant 0 : index
    %c0_2 = arith.constant 0 : index
    %0 = vector.load %arg1[%c0, %c0_0, %c0_1, %c0_2] : memref<1x8x8x128xf32, #tpu.memory_space<vmem>>, vector<1x8x8x128xf32>
    %1 = vector.shape_cast %0 : vector<1x8x8x128xf32> to vector<8x8x128xf32>
    %2 = vector.shape_cast %1 : vector<8x8x128xf32> to vector<64x128xf32>
    %3 = arith.truncf %2 : vector<64x128xf32> to vector<64x128xbf16>
    %c0_3 = arith.constant 0 : index
    %c0_4 = arith.constant 0 : index
    %4 = vector.load %arg3[%c0_3, %c0_4] : memref<128x128xbf16, #tpu.memory_space<vmem>>, vector<128x128xbf16>
    %cst = arith.constant dense<0.000000e+00> : vector<64x128xf32>
    %5 = tpu.matmul %3, %4, %cst {dimension_numbers = #tpu.dot_dimension_numbers<[1], [0], [0], [1], [0, 0, 1, 1], [], []>} : vector<64x128xbf16>, vector<128x128xbf16>, vector<64x128xf32> -> vector<64x128xf32>
    %c0_5 = arith.constant 0 : index
    %c0_6 = arith.constant 0 : index
    %6 = vector.load %arg4[%c0_5, %c0_6] : memref<1x128xf32, #tpu.memory_space<vmem>>, vector<1x128xf32>
    %7 = vector.broadcast %6 : vector<1x128xf32> to vector<64x128xf32>
    %8 = arith.addf %5, %7 : vector<64x128xf32>
    %cst_7 = arith.constant 0.000000e+00 : f32
    %9 = vector.broadcast %cst_7 : f32 to vector<64x128xf32>
    %10 = arith.maximumf %8, %9 : vector<64x128xf32>
    %11 = vector.shape_cast %10 : vector<64x128xf32> to vector<8x8x128xf32>
    %c0_8 = arith.constant 0 : index
    %c0_9 = arith.constant 0 : index
    %12 = vector.load %arg2[%c0_8, %c0_9] : memref<9x32xf32, #tpu.memory_space<vmem>>, vector<9x32xf32>
    %13 = vector.extract_strided_slice %1 {offsets = [0, 0, 0], sizes = [8, 8, 32], strides = [1, 1, 1]} : vector<8x8x128xf32> to vector<8x8x32xf32>
    %14 = vector.extract_strided_slice %1 {offsets = [0, 0, 32], sizes = [8, 8, 32], strides = [1, 1, 1]} : vector<8x8x128xf32> to vector<8x8x32xf32>
    %15 = vector.extract_strided_slice %1 {offsets = [0, 0, 64], sizes = [8, 8, 32], strides = [1, 1, 1]} : vector<8x8x128xf32> to vector<8x8x32xf32>
    %16 = vector.extract_strided_slice %1 {offsets = [0, 0, 96], sizes = [8, 8, 32], strides = [1, 1, 1]} : vector<8x8x128xf32> to vector<8x8x32xf32>
    %17 = vector.extract_strided_slice %12 {offsets = [4, 0], sizes = [1, 32], strides = [1, 1]} : vector<9x32xf32> to vector<1x32xf32>
    %18 = vector.shape_cast %17 : vector<1x32xf32> to vector<1x1x32xf32>
    %19 = vector.broadcast %18 : vector<1x1x32xf32> to vector<8x8x32xf32>
    %20 = arith.mulf %13, %19 : vector<8x8x32xf32>
    %21 = vector.extract_strided_slice %12 {offsets = [5, 0], sizes = [1, 32], strides = [1, 1]} : vector<9x32xf32> to vector<1x32xf32>
    %22 = vector.shape_cast %21 : vector<1x32xf32> to vector<1x1x32xf32>
    %23 = vector.broadcast %22 : vector<1x1x32xf32> to vector<8x8x32xf32>
    %24 = arith.mulf %14, %23 : vector<8x8x32xf32>
    %25 = arith.addf %20, %24 : vector<8x8x32xf32>
    %26 = vector.extract_strided_slice %12 {offsets = [7, 0], sizes = [1, 32], strides = [1, 1]} : vector<9x32xf32> to vector<1x32xf32>
    %27 = vector.shape_cast %26 : vector<1x32xf32> to vector<1x1x32xf32>
    %28 = vector.broadcast %27 : vector<1x1x32xf32> to vector<8x8x32xf32>
    %29 = arith.mulf %15, %28 : vector<8x8x32xf32>
    %30 = arith.addf %25, %29 : vector<8x8x32xf32>
    %31 = vector.extract_strided_slice %12 {offsets = [8, 0], sizes = [1, 32], strides = [1, 1]} : vector<9x32xf32> to vector<1x32xf32>
    %32 = vector.shape_cast %31 : vector<1x32xf32> to vector<1x1x32xf32>
    %33 = vector.broadcast %32 : vector<1x1x32xf32> to vector<8x8x32xf32>
    %34 = arith.mulf %16, %33 : vector<8x8x32xf32>
    %35 = arith.addf %30, %34 : vector<8x8x32xf32>
    %36 = vector.extract_strided_slice %12 {offsets = [3, 0], sizes = [1, 32], strides = [1, 1]} : vector<9x32xf32> to vector<1x32xf32>
    %37 = vector.shape_cast %36 : vector<1x32xf32> to vector<1x1x32xf32>
    %38 = vector.broadcast %37 : vector<1x1x32xf32> to vector<8x8x32xf32>
    %39 = arith.mulf %14, %38 : vector<8x8x32xf32>
    %40 = vector.extract_strided_slice %12 {offsets = [6, 0], sizes = [1, 32], strides = [1, 1]} : vector<9x32xf32> to vector<1x32xf32>
    %41 = vector.shape_cast %40 : vector<1x32xf32> to vector<1x1x32xf32>
    %42 = vector.broadcast %41 : vector<1x1x32xf32> to vector<8x8x32xf32>
    %43 = arith.mulf %16, %42 : vector<8x8x32xf32>
    %44 = arith.addf %39, %43 : vector<8x8x32xf32>
    %45 = vector.extract_strided_slice %12 {offsets = [1, 0], sizes = [1, 32], strides = [1, 1]} : vector<9x32xf32> to vector<1x32xf32>
    %46 = vector.shape_cast %45 : vector<1x32xf32> to vector<1x1x32xf32>
    %47 = vector.broadcast %46 : vector<1x1x32xf32> to vector<8x8x32xf32>
    %48 = arith.mulf %15, %47 : vector<8x8x32xf32>
    %49 = vector.extract_strided_slice %12 {offsets = [2, 0], sizes = [1, 32], strides = [1, 1]} : vector<9x32xf32> to vector<1x32xf32>
    %50 = vector.shape_cast %49 : vector<1x32xf32> to vector<1x1x32xf32>
    %51 = vector.broadcast %50 : vector<1x1x32xf32> to vector<8x8x32xf32>
    %52 = arith.mulf %16, %51 : vector<8x8x32xf32>
    %53 = arith.addf %48, %52 : vector<8x8x32xf32>
    %54 = vector.extract_strided_slice %12 {offsets = [0, 0], sizes = [1, 32], strides = [1, 1]} : vector<9x32xf32> to vector<1x32xf32>
    %55 = vector.shape_cast %54 : vector<1x32xf32> to vector<1x1x32xf32>
    %56 = vector.broadcast %55 : vector<1x1x32xf32> to vector<8x8x32xf32>
    %57 = arith.mulf %16, %56 : vector<8x8x32xf32>
    %cst_10 = arith.constant 0.000000e+00 : f32
    %58 = vector.broadcast %cst_10 : f32 to vector<1x8x32xf32>
    %cst_11 = arith.constant 0.000000e+00 : f32
    %59 = vector.broadcast %cst_11 : f32 to vector<8x1x32xf32>
    %60 = vector.extract_strided_slice %44 {offsets = [0, 0, 0], sizes = [8, 7, 32], strides = [1, 1, 1]} : vector<8x8x32xf32> to vector<8x7x32xf32>
    %61 = tpu.concatenate %59, %60 in 1 : vector<8x1x32xf32>, vector<8x7x32xf32> -> vector<8x8x32xf32>
    %62 = arith.addf %35, %61 : vector<8x8x32xf32>
    %63 = vector.extract_strided_slice %57 {offsets = [0, 0, 0], sizes = [8, 7, 32], strides = [1, 1, 1]} : vector<8x8x32xf32> to vector<8x7x32xf32>
    %64 = tpu.concatenate %59, %63 in 1 : vector<8x1x32xf32>, vector<8x7x32xf32> -> vector<8x8x32xf32>
    %65 = arith.addf %53, %64 : vector<8x8x32xf32>
    %66 = vector.extract_strided_slice %65 {offsets = [0, 0, 0], sizes = [7, 8, 32], strides = [1, 1, 1]} : vector<8x8x32xf32> to vector<7x8x32xf32>
    %67 = tpu.concatenate %58, %66 in 0 : vector<1x8x32xf32>, vector<7x8x32xf32> -> vector<8x8x32xf32>
    %68 = arith.addf %62, %67 : vector<8x8x32xf32>
    %c0_12 = arith.constant 0 : index
    %c0_13 = arith.constant 0 : index
    %69 = vector.load %arg5[%c0_12, %c0_13] : memref<9x32xf32, #tpu.memory_space<vmem>>, vector<9x32xf32>
    %70 = vector.extract_strided_slice %11 {offsets = [0, 0, 0], sizes = [8, 8, 32], strides = [1, 1, 1]} : vector<8x8x128xf32> to vector<8x8x32xf32>
    %71 = vector.extract_strided_slice %11 {offsets = [0, 0, 32], sizes = [8, 8, 32], strides = [1, 1, 1]} : vector<8x8x128xf32> to vector<8x8x32xf32>
    %72 = vector.extract_strided_slice %11 {offsets = [0, 0, 64], sizes = [8, 8, 32], strides = [1, 1, 1]} : vector<8x8x128xf32> to vector<8x8x32xf32>
    %73 = vector.extract_strided_slice %11 {offsets = [0, 0, 96], sizes = [8, 8, 32], strides = [1, 1, 1]} : vector<8x8x128xf32> to vector<8x8x32xf32>
    %74 = vector.extract_strided_slice %69 {offsets = [4, 0], sizes = [1, 32], strides = [1, 1]} : vector<9x32xf32> to vector<1x32xf32>
    %75 = vector.shape_cast %74 : vector<1x32xf32> to vector<1x1x32xf32>
    %76 = vector.broadcast %75 : vector<1x1x32xf32> to vector<8x8x32xf32>
    %77 = arith.mulf %70, %76 : vector<8x8x32xf32>
    %78 = vector.extract_strided_slice %69 {offsets = [5, 0], sizes = [1, 32], strides = [1, 1]} : vector<9x32xf32> to vector<1x32xf32>
    %79 = vector.shape_cast %78 : vector<1x32xf32> to vector<1x1x32xf32>
    %80 = vector.broadcast %79 : vector<1x1x32xf32> to vector<8x8x32xf32>
    %81 = arith.mulf %71, %80 : vector<8x8x32xf32>
    %82 = arith.addf %77, %81 : vector<8x8x32xf32>
    %83 = vector.extract_strided_slice %69 {offsets = [7, 0], sizes = [1, 32], strides = [1, 1]} : vector<9x32xf32> to vector<1x32xf32>
    %84 = vector.shape_cast %83 : vector<1x32xf32> to vector<1x1x32xf32>
    %85 = vector.broadcast %84 : vector<1x1x32xf32> to vector<8x8x32xf32>
    %86 = arith.mulf %72, %85 : vector<8x8x32xf32>
    %87 = arith.addf %82, %86 : vector<8x8x32xf32>
    %88 = vector.extract_strided_slice %69 {offsets = [8, 0], sizes = [1, 32], strides = [1, 1]} : vector<9x32xf32> to vector<1x32xf32>
    %89 = vector.shape_cast %88 : vector<1x32xf32> to vector<1x1x32xf32>
    %90 = vector.broadcast %89 : vector<1x1x32xf32> to vector<8x8x32xf32>
    %91 = arith.mulf %73, %90 : vector<8x8x32xf32>
    %92 = arith.addf %87, %91 : vector<8x8x32xf32>
    %93 = vector.extract_strided_slice %69 {offsets = [3, 0], sizes = [1, 32], strides = [1, 1]} : vector<9x32xf32> to vector<1x32xf32>
    %94 = vector.shape_cast %93 : vector<1x32xf32> to vector<1x1x32xf32>
    %95 = vector.broadcast %94 : vector<1x1x32xf32> to vector<8x8x32xf32>
    %96 = arith.mulf %71, %95 : vector<8x8x32xf32>
    %97 = vector.extract_strided_slice %69 {offsets = [6, 0], sizes = [1, 32], strides = [1, 1]} : vector<9x32xf32> to vector<1x32xf32>
    %98 = vector.shape_cast %97 : vector<1x32xf32> to vector<1x1x32xf32>
    %99 = vector.broadcast %98 : vector<1x1x32xf32> to vector<8x8x32xf32>
    %100 = arith.mulf %73, %99 : vector<8x8x32xf32>
    %101 = arith.addf %96, %100 : vector<8x8x32xf32>
    %102 = vector.extract_strided_slice %69 {offsets = [1, 0], sizes = [1, 32], strides = [1, 1]} : vector<9x32xf32> to vector<1x32xf32>
    %103 = vector.shape_cast %102 : vector<1x32xf32> to vector<1x1x32xf32>
    %104 = vector.broadcast %103 : vector<1x1x32xf32> to vector<8x8x32xf32>
    %105 = arith.mulf %72, %104 : vector<8x8x32xf32>
    %106 = vector.extract_strided_slice %69 {offsets = [2, 0], sizes = [1, 32], strides = [1, 1]} : vector<9x32xf32> to vector<1x32xf32>
    %107 = vector.shape_cast %106 : vector<1x32xf32> to vector<1x1x32xf32>
    %108 = vector.broadcast %107 : vector<1x1x32xf32> to vector<8x8x32xf32>
    %109 = arith.mulf %73, %108 : vector<8x8x32xf32>
    %110 = arith.addf %105, %109 : vector<8x8x32xf32>
    %111 = vector.extract_strided_slice %69 {offsets = [0, 0], sizes = [1, 32], strides = [1, 1]} : vector<9x32xf32> to vector<1x32xf32>
    %112 = vector.shape_cast %111 : vector<1x32xf32> to vector<1x1x32xf32>
    %113 = vector.broadcast %112 : vector<1x1x32xf32> to vector<8x8x32xf32>
    %114 = arith.mulf %73, %113 : vector<8x8x32xf32>
    %cst_14 = arith.constant 0.000000e+00 : f32
    %115 = vector.broadcast %cst_14 : f32 to vector<1x8x32xf32>
    %cst_15 = arith.constant 0.000000e+00 : f32
    %116 = vector.broadcast %cst_15 : f32 to vector<8x1x32xf32>
    %117 = vector.extract_strided_slice %101 {offsets = [0, 0, 0], sizes = [8, 7, 32], strides = [1, 1, 1]} : vector<8x8x32xf32> to vector<8x7x32xf32>
    %118 = tpu.concatenate %116, %117 in 1 : vector<8x1x32xf32>, vector<8x7x32xf32> -> vector<8x8x32xf32>
    %119 = arith.addf %92, %118 : vector<8x8x32xf32>
    %120 = vector.extract_strided_slice %114 {offsets = [0, 0, 0], sizes = [8, 7, 32], strides = [1, 1, 1]} : vector<8x8x32xf32> to vector<8x7x32xf32>
    %121 = tpu.concatenate %116, %120 in 1 : vector<8x1x32xf32>, vector<8x7x32xf32> -> vector<8x8x32xf32>
    %122 = arith.addf %110, %121 : vector<8x8x32xf32>
    %123 = vector.extract_strided_slice %122 {offsets = [0, 0, 0], sizes = [7, 8, 32], strides = [1, 1, 1]} : vector<8x8x32xf32> to vector<7x8x32xf32>
    %124 = tpu.concatenate %115, %123 in 0 : vector<1x8x32xf32>, vector<7x8x32xf32> -> vector<8x8x32xf32>
    %125 = arith.addf %119, %124 : vector<8x8x32xf32>
    %126 = vector.shape_cast %68 : vector<8x8x32xf32> to vector<64x32xf32>
    %127 = arith.truncf %126 : vector<64x32xf32> to vector<64x32xbf16>
    %c0_16 = arith.constant 0 : index
    %c0_17 = arith.constant 0 : index
    %128 = vector.load %arg6[%c0_16, %c0_17] : memref<32x64xbf16, #tpu.memory_space<vmem>>, vector<32x64xbf16>
    %cst_18 = arith.constant dense<0.000000e+00> : vector<64x64xf32>
    %129 = tpu.matmul %127, %128, %cst_18 {dimension_numbers = #tpu.dot_dimension_numbers<[1], [0], [0], [1], [0, 0, 1, 1], [], []>} : vector<64x32xbf16>, vector<32x64xbf16>, vector<64x64xf32> -> vector<64x64xf32>
    %130 = vector.shape_cast %125 : vector<8x8x32xf32> to vector<64x32xf32>
    %131 = arith.truncf %130 : vector<64x32xf32> to vector<64x32xbf16>
    %c0_19 = arith.constant 0 : index
    %c0_20 = arith.constant 0 : index
    %132 = vector.load %arg7[%c0_19, %c0_20] : memref<32x64xbf16, #tpu.memory_space<vmem>>, vector<32x64xbf16>
    %cst_21 = arith.constant dense<0.000000e+00> : vector<64x64xf32>
    %133 = tpu.matmul %131, %132, %cst_21 {dimension_numbers = #tpu.dot_dimension_numbers<[1], [0], [0], [1], [0, 0, 1, 1], [], []>} : vector<64x32xbf16>, vector<32x64xbf16>, vector<64x64xf32> -> vector<64x64xf32>
    %134 = arith.addf %129, %133 : vector<64x64xf32>
    %c0_22 = arith.constant 0 : index
    %c0_23 = arith.constant 0 : index
    %135 = vector.load %arg8[%c0_22, %c0_23] : memref<1x64xf32, #tpu.memory_space<vmem>>, vector<1x64xf32>
    %136 = vector.broadcast %135 : vector<1x64xf32> to vector<64x64xf32>
    %137 = arith.addf %134, %136 : vector<64x64xf32>
    %cst_24 = arith.constant 0.000000e+00 : f32
    %138 = vector.broadcast %cst_24 : f32 to vector<64x64xf32>
    %139 = arith.maximumf %137, %138 : vector<64x64xf32>
    %c0_25 = arith.constant 0 : index
    %c0_26 = arith.constant 0 : index
    %c0_27 = arith.constant 0 : index
    %140 = vector.load %arg9[%c0_25, %c0_26, %c0_27] : memref<1x64x64xf32, #tpu.memory_space<vmem>>, vector<1x64x64xf32>
    %141 = vector.shape_cast %140 : vector<1x64x64xf32> to vector<64x64xf32>
    %142 = vector.shape_cast %139 : vector<64x64xf32> to vector<1x64x64xf32>
    tpu.vector_store %arg9[%c0_25, %c0_26, %c0_27], %142 {strides = array<i32>} : memref<1x64x64xf32, #tpu.memory_space<vmem>>, vector<1x64x64xf32>,
    return
  }
  func.func @transform_0(%arg0: i32) -> (i32, i32, i32, i32) {
    %c0_i32 = arith.constant 0 : i32
    %c0_i32_0 = arith.constant 0 : i32
    %c0_i32_1 = arith.constant 0 : i32
    %c0_i32_2 = arith.constant 0 : i32
    return %arg0, %c0_i32, %c0_i32_0, %c0_i32_1 : i32, i32, i32, i32
  }
  func.func @transform_1(%arg0: i32) -> (i32, i32) {
    %c0_i32 = arith.constant 0 : i32
    %c0_i32_0 = arith.constant 0 : i32
    %c0_i32_1 = arith.constant 0 : i32
    return %c0_i32, %c0_i32_0 : i32, i32
  }
  func.func @transform_2(%arg0: i32) -> (i32, i32) {
    %c0_i32 = arith.constant 0 : i32
    %c0_i32_0 = arith.constant 0 : i32
    %c0_i32_1 = arith.constant 0 : i32
    return %c0_i32, %c0_i32_0 : i32, i32
  }
  func.func @transform_3(%arg0: i32) -> (i32, i32) {
    %c0_i32 = arith.constant 0 : i32
    %c0_i32_0 = arith.constant 0 : i32
    %c0_i32_1 = arith.constant 0 : i32
    return %c0_i32, %c0_i32_0 : i32, i32
  }
  func.func @transform_4(%arg0: i32) -> (i32, i32) {
    %c0_i32 = arith.constant 0 : i32
    %c0_i32_0 = arith.constant 0 : i32
    %c0_i32_1 = arith.constant 0 : i32
    return %c0_i32, %c0_i32_0 : i32, i32
  }
  func.func @transform_5(%arg0: i32) -> (i32, i32) {
    %c0_i32 = arith.constant 0 : i32
    %c0_i32_0 = arith.constant 0 : i32
    %c0_i32_1 = arith.constant 0 : i32
    return %c0_i32, %c0_i32_0 : i32, i32
  }
  func.func @transform_6(%arg0: i32) -> (i32, i32) {
    %c0_i32 = arith.constant 0 : i32
    %c0_i32_0 = arith.constant 0 : i32
    %c0_i32_1 = arith.constant 0 : i32
    return %c0_i32, %c0_i32_0 : i32, i32
  }
  func.func @transform_7(%arg0: i32) -> (i32, i32) {
    %c0_i32 = arith.constant 0 : i32
    %c0_i32_0 = arith.constant 0 : i32
    %c0_i32_1 = arith.constant 0 : i32
    return %c0_i32, %c0_i32_0 : i32, i32
  }
  func.func @transform_8(%arg0: i32) -> (i32, i32, i32) {
    %c0_i32 = arith.constant 0 : i32
    %c0_i32_0 = arith.constant 0 : i32
    %c0_i32_1 = arith.constant 0 : i32
    return %arg0, %c0_i32, %c0_i32_0 : i32, i32, i32
  }
}

</mosaic_0001>

<llo_original>
// kernel: _lambda_.1
$region0: #{_lambda_.1}
  #allocation0 [shape = 'u32[]', space=smem, size = 0x4, offset = 0x4, fixed_abs, tag = 'smem constant byte address 0x4 - core index']
  #allocation1 [shape = 'u32[144,128]{1,0:T(1,128)}', space=vmem, size = 0x12000, scoped, tag = 'internal scratch']
  %s0 = inlined_call_operand.vmem [shape: f32[2,8,8,128], index: 0, kind: input, shape index: {}]
  %s1 = inlined_call_operand.vmem [shape: f32[9,32], index: 1, kind: input, shape index: {}]
  %s2 = inlined_call_operand.vmem [shape: bf16[128,128], index: 2, kind: input, shape index: {}]
  %s3 = inlined_call_operand.vmem [shape: f32[1,128], index: 3, kind: input, shape index: {}]
  %s4 = inlined_call_operand.vmem [shape: f32[9,32], index: 4, kind: input, shape index: {}]
  %s5 = inlined_call_operand.vmem [shape: bf16[32,64], index: 5, kind: input, shape index: {}]
  %s6 = inlined_call_operand.vmem [shape: bf16[32,64], index: 6, kind: input, shape index: {}]
  %s7 = inlined_call_operand.vmem [shape: f32[1,64], index: 7, kind: input, shape index: {}]
  %s8 = inlined_call_operand.hbm [shape: f32[2,64,64], index: 8, kind: output, shape index: {}]
  %s9 = sld [smem:[#allocation0]]
  $region65: #{_lambda_.1} parent=0
    _
  %s11 = ssub.s32 1, %s9
  %s12 = scalar_select 0, %s11, %s9
  $region1: #{_lambda_.1} parent=0
    #allocation2 [shape = 'u8[65536]{0}', space=vmem, size = 0x10000, scoped, tag = 'output window, operand 0']
    #allocation3 [shape = 's32[2]{0}', space=sflag, size = 0x8, scoped, tag = 'scoped memory for _lambda_.1']
    %13 = vsyncpa [#allocation3], 0
    %s14 = scalar_lea.sflag [#allocation3], 1
    %15 = vsyncpa %s14, 0
    loop: start=0, step=1, limit=4
    $region2: #{_lambda_.1} parent=1 // loop_pre_header
      _
    $region3: #{_lambda_.1} parent=1 // loop_header
      %s17 = sphi 0, %s21
      %p18 = scmp.ge.s32.totalorder %s17, 4
      %s27 = sphi 0, %s29
      %s30 = sphi 0, %s27
      %s31 = sphi 0, %s30
      %s47 = sphi 0, %s31
      %s51 = sphi 0, %s51
      %s53 = sphi 0, %s51
      %s54 = sphi 0, %s53
      %s68 = sphi 0, %s54
      %s72 = sphi 0, %s72
      %s74 = sphi 0, %s72
      %s75 = sphi 0, %s74
      %s89 = sphi 0, %s75
      %s93 = sphi 0, %s93
      %s95 = sphi 0, %s93
      %s96 = sphi 0, %s95
      %s110 = sphi 0, %s96
      %s114 = sphi 0, %s114
      %s116 = sphi 0, %s114
      %s117 = sphi 0, %s116
      %s131 = sphi 0, %s117
      %s135 = sphi 0, %s135
      %s137 = sphi 0, %s135
      %s138 = sphi 0, %s137
      %s152 = sphi 0, %s138
      %s156 = sphi 0, %s156
      %s158 = sphi 0, %s156
      %s159 = sphi 0, %s158
      %s173 = sphi 0, %s159
      %s177 = sphi 0, %s177
      %s179 = sphi 0, %s177
      %s180 = sphi 0, %s179
      %s194 = sphi 0, %s180
      %s200 = sphi 0, %s202
      %s203 = sphi 0, %s200
      %s204 = sphi 0, %s203
      %s220 = sphi 0, %s204
    $region4: #{_lambda_.1} parent=1 // loop_header_branch
      %20 = sbr.rel (%p18) target = $region8
    $region5: #{_lambda_.1} parent=1 // loop_body
      %s22 = ssub.s32 %s17, 1
      %s23 = ssub.s32 %s17, 2
      %s24 = sadd.s32 %s17, 1
      %s25 = ssub.s32 %s17, %s24
      %p26 = scmp.eq.s32.totalorder %s25, 0
      %s28 = sadd.s32 %s27, 1
      %s29 = scalar_select %p26, %s27, %s28
      %p32 = pneg %p26
      %p33 = scmp.eq.s32.totalorder %s17, 1
      %p34 = por %p32, %p33
      %p35 = scmp.ne.s32.totalorder %s27, %s30
      %p36 = scmp.eq.s32.totalorder %s17, 0
      %p37 = por %p35, %p36
      %p38 = scmp.ne.s32.totalorder %s27, %s30
      %p39 = scmp.eq.s32.totalorder %s22, 1
      %p40 = por %p38, %p39
      %p41 = scmp.ne.s32.totalorder %s30, %s31
      %p42 = scmp.eq.s32.totalorder %s22, 0
      %p43 = por %p41, %p42
      %p44 = scmp.ne.s32.totalorder %s30, %s31
      %p45 = scmp.eq.s32.totalorder %s23, 1
      %p46 = por %p44, %p45
      %p48 = scmp.ne.s32.totalorder %s31, %s47
      %p49 = scmp.eq.s32.totalorder %s23, 0
      %p50 = por %p48, %p49
      %s52 = sadd.s32 %s51, 1
      %p55 = scmp.eq.s32.totalorder %s17, 1
      %p56 = scmp.ne.s32.totalorder %s51, %s53
      %p57 = scmp.eq.s32.totalorder %s17, 0
      %p58 = por %p56, %p57
      %p59 = scmp.ne.s32.totalorder %s51, %s53
      %p60 = scmp.eq.s32.totalorder %s22, 1
      %p61 = por %p59, %p60
      %p62 = scmp.ne.s32.totalorder %s53, %s54
      %p63 = scmp.eq.s32.totalorder %s22, 0
      %p64 = por %p62, %p63
      %p65 = scmp.ne.s32.totalorder %s53, %s54
      %p66 = scmp.eq.s32.totalorder %s23, 1
      %p67 = por %p65, %p66
      %p69 = scmp.ne.s32.totalorder %s54, %s68
      %p70 = scmp.eq.s32.totalorder %s23, 0
      %p71 = por %p69, %p70
      %s73 = sadd.s32 %s72, 1
      %p76 = scmp.eq.s32.totalorder %s17, 1
      %p77 = scmp.ne.s32.totalorder %s72, %s74
      %p78 = scmp.eq.s32.totalorder %s17, 0
      %p79 = por %p77, %p78
      %p80 = scmp.ne.s32.totalorder %s72, %s74
      %p81 = scmp.eq.s32.totalorder %s22, 1
      %p82 = por %p80, %p81
      %p83 = scmp.ne.s32.totalorder %s74, %s75
      %p84 = scmp.eq.s32.totalorder %s22, 0
      %p85 = por %p83, %p84
      %p86 = scmp.ne.s32.totalorder %s74, %s75
      %p87 = scmp.eq.s32.totalorder %s23, 1
      %p88 = por %p86, %p87
      %p90 = scmp.ne.s32.totalorder %s75, %s89
      %p91 = scmp.eq.s32.totalorder %s23, 0
      %p92 = por %p90, %p91
      %s94 = sadd.s32 %s93, 1
      %p97 = scmp.eq.s32.totalorder %s17, 1
      %p98 = scmp.ne.s32.totalorder %s93, %s95
      %p99 = scmp.eq.s32.totalorder %s17, 0
      %p100 = por %p98, %p99
      %p101 = scmp.ne.s32.totalorder %s93, %s95
      %p102 = scmp.eq.s32.totalorder %s22, 1
      %p103 = por %p101, %p102
      %p104 = scmp.ne.s32.totalorder %s95, %s96
      %p105 = scmp.eq.s32.totalorder %s22, 0
      %p106 = por %p104, %p105
      %p107 = scmp.ne.s32.totalorder %s95, %s96
      %p108 = scmp.eq.s32.totalorder %s23, 1
      %p109 = por %p107, %p108
      %p111 = scmp.ne.s32.totalorder %s96, %s110
      %p112 = scmp.eq.s32.totalorder %s23, 0
      %p113 = por %p111, %p112
      %s115 = sadd.s32 %s114, 1
      %p118 = scmp.eq.s32.totalorder %s17, 1
      %p119 = scmp.ne.s32.totalorder %s114, %s116
      %p120 = scmp.eq.s32.totalorder %s17, 0
      %p121 = por %p119, %p120
      %p122 = scmp.ne.s32.totalorder %s114, %s116
      %p123 = scmp.eq.s32.totalorder %s22, 1
      %p124 = por %p122, %p123
      %p125 = scmp.ne.s32.totalorder %s116, %s117
      %p126 = scmp.eq.s32.totalorder %s22, 0
      %p127 = por %p125, %p126
      %p128 = scmp.ne.s32.totalorder %s116, %s117
      %p129 = scmp.eq.s32.totalorder %s23, 1
      %p130 = por %p128, %p129
      %p132 = scmp.ne.s32.totalorder %s117, %s131
      %p133 = scmp.eq.s32.totalorder %s23, 0
      %p134 = por %p132, %p133
      %s136 = sadd.s32 %s135, 1
      %p139 = scmp.eq.s32.totalorder %s17, 1
      %p140 = scmp.ne.s32.totalorder %s135, %s137
      %p141 = scmp.eq.s32.totalorder %s17, 0
      %p142 = por %p140, %p141
      %p143 = scmp.ne.s32.totalorder %s135, %s137
      %p144 = scmp.eq.s32.totalorder %s22, 1
      %p145 = por %p143, %p144
      %p146 = scmp.ne.s32.totalorder %s137, %s138
      %p147 = scmp.eq.s32.totalorder %s22, 0
      %p148 = por %p146, %p147
      %p149 = scmp.ne.s32.totalorder %s137, %s138
      %p150 = scmp.eq.s32.totalorder %s23, 1
      %p151 = por %p149, %p150
      %p153 = scmp.ne.s32.totalorder %s138, %s152
      %p154 = scmp.eq.s32.totalorder %s23, 0
      %p155 = por %p153, %p154
      %s157 = sadd.s32 %s156, 1
      %p160 = scmp.eq.s32.totalorder %s17, 1
      %p161 = scmp.ne.s32.totalorder %s156, %s158
      %p162 = scmp.eq.s32.totalorder %s17, 0
      %p163 = por %p161, %p162
      %p164 = scmp.ne.s32.totalorder %s156, %s158
      %p165 = scmp.eq.s32.totalorder %s22, 1
      %p166 = por %p164, %p165
      %p167 = scmp.ne.s32.totalorder %s158, %s159
      %p168 = scmp.eq.s32.totalorder %s22, 0
      %p169 = por %p167, %p168
      %p170 = scmp.ne.s32.totalorder %s158, %s159
      %p171 = scmp.eq.s32.totalorder %s23, 1
      %p172 = por %p170, %p171
      %p174 = scmp.ne.s32.totalorder %s159, %s173
      %p175 = scmp.eq.s32.totalorder %s23, 0
      %p176 = por %p174, %p175
      %s178 = sadd.s32 %s177, 1
      %p181 = scmp.eq.s32.totalorder %s17, 1
      %p182 = scmp.ne.s32.totalorder %s177, %s179
      %p183 = scmp.eq.s32.totalorder %s17, 0
      %p184 = por %p182, %p183
      %p185 = scmp.ne.s32.totalorder %s177, %s179
      %p186 = scmp.eq.s32.totalorder %s22, 1
      %p187 = por %p185, %p186
      %p188 = scmp.ne.s32.totalorder %s179, %s180
      %p189 = scmp.eq.s32.totalorder %s22, 0
      %p190 = por %p188, %p189
      %p191 = scmp.ne.s32.totalorder %s179, %s180
      %p192 = scmp.eq.s32.totalorder %s23, 1
      %p193 = por %p191, %p192
      %p195 = scmp.ne.s32.totalorder %s180, %s194
      %p196 = scmp.eq.s32.totalorder %s23, 0
      %p197 = por %p195, %p196
      %s198 = ssub.s32 %s17, %s24
      %p199 = scmp.eq.s32.totalorder %s198, 0
      %s201 = sadd.s32 %s200, 1
      %s202 = scalar_select %p199, %s200, %s201
      %p205 = pneg %p199
      %p206 = scmp.eq.s32.totalorder %s17, 1
      %p207 = por %p205, %p206
      %p208 = scmp.ne.s32.totalorder %s200, %s203
      %p209 = scmp.eq.s32.totalorder %s17, 0
      %p210 = por %p208, %p209
      %p211 = scmp.ne.s32.totalorder %s200, %s203
      %p212 = scmp.eq.s32.totalorder %s22, 1
      %p213 = por %p211, %p212
      %p214 = scmp.ne.s32.totalorder %s203, %s204
      %p215 = scmp.eq.s32.totalorder %s22, 0
      %p216 = por %p214, %p215
      %p217 = scmp.ne.s32.totalorder %s203, %s204
      %p218 = scmp.eq.s32.totalorder %s23, 1
      %p219 = por %p217, %p218
      %p221 = scmp.ne.s32.totalorder %s204, %s220
      %p222 = scmp.eq.s32.totalorder %s23, 0
      %p223 = por %p221, %p222
      %p224 = scmp.le.s32.totalorder 1, %s17
      %p225 = scmp.lt.s32.totalorder %s17, 3
      %p226 = pnand %p224, %p225
      %p227 = pneg %p226
      // Predicated region
      $region9: #{_lambda_.1} parent=5 // pred_check
        _
      $region10: #{_lambda_.1} parent=5 // pred_check_branch
        %229 = sbr.rel (%p226) target = $region12
      $region11: #{_lambda_.1} parent=5 // pred_region
        %s230 = ssub.s32 %s17, 1
        // Predicated region
        $region13: #{_lambda_.1} parent=11 // pred_check
          %p231 = pneg %p64
        $region14: #{_lambda_.1} parent=11 // pred_check_branch
          %233 = sbr.rel (%p231) target = $region16
        $region15: #{_lambda_.1} parent=11 // pred_region
          _
        $region16: #{_lambda_.1} parent=11 // pred_fallthru
          _
        // Predicated region
        $region17: #{_lambda_.1} parent=11 // pred_check
          %p234 = pneg %p85
        $region18: #{_lambda_.1} parent=11 // pred_check_branch
          %236 = sbr.rel (%p234) target = $region20
        $region19: #{_lambda_.1} parent=11 // pred_region
          _
        $region20: #{_lambda_.1} parent=11 // pred_fallthru
          _
        // Predicated region
        $region21: #{_lambda_.1} parent=11 // pred_check
          %p237 = pneg %p106
        $region22: #{_lambda_.1} parent=11 // pred_check_branch
          %239 = sbr.rel (%p237) target = $region24
        $region23: #{_lambda_.1} parent=11 // pred_region
          _
        $region24: #{_lambda_.1} parent=11 // pred_fallthru
          _
        // Predicated region
        $region25: #{_lambda_.1} parent=11 // pred_check
          %p240 = pneg %p127
        $region26: #{_lambda_.1} parent=11 // pred_check_branch
          %242 = sbr.rel (%p240) target = $region28
        $region27: #{_lambda_.1} parent=11 // pred_region
          _
        $region28: #{_lambda_.1} parent=11 // pred_fallthru
          _
        // Predicated region
        $region29: #{_lambda_.1} parent=11 // pred_check
          %p243 = pneg %p148
        $region30: #{_lambda_.1} parent=11 // pred_check_branch
          %245 = sbr.rel (%p243) target = $region32
        $region31: #{_lambda_.1} parent=11 // pred_region
          _
        $region32: #{_lambda_.1} parent=11 // pred_fallthru
          _
        // Predicated region
        $region33: #{_lambda_.1} parent=11 // pred_check
          %p246 = pneg %p169
        $region34: #{_lambda_.1} parent=11 // pred_check_branch
          %248 = sbr.rel (%p246) target = $region36
        $region35: #{_lambda_.1} parent=11 // pred_region
          _
        $region36: #{_lambda_.1} parent=11 // pred_fallthru
          _
        // Predicated region
        $region37: #{_lambda_.1} parent=11 // pred_check
          %p249 = pneg %p190
        $region38: #{_lambda_.1} parent=11 // pred_check_branch
          %251 = sbr.rel (%p249) target = $region40
        $region39: #{_lambda_.1} parent=11 // pred_region
          _
        $region40: #{_lambda_.1} parent=11 // pred_fallthru
          _
      $region12: #{_lambda_.1} parent=5 // pred_fallthru
        _
      %p252 = scmp.lt.s32.totalorder %s17, 2
      // Predicated region
      $region41: #{_lambda_.1} parent=5 // pred_check
        %p253 = pneg %p252
      $region42: #{_lambda_.1} parent=5 // pred_check_branch
        %255 = sbr.rel (%p253) target = $region44
      $region43: #{_lambda_.1} parent=5 // pred_region
        // Predicated region
        $region45: #{_lambda_.1} parent=43 // pred_check
          %p256 = pneg %p37
        $region46: #{_lambda_.1} parent=43 // pred_check_branch
          %258 = sbr.rel (%p256) target = $region48
        $region47: #{_lambda_.1} parent=43 // pred_region
          %p259 = scmp.lt.s32.totalorder %s17, 1
          %s260 = scalar_select %p259, %s17, 1
          %s261 = smul.addr %s260, 8
          %s262 = smul.addr %s261, 8
          %s263 = scalar_lea.vmem %s0, %s262
        $region48: #{_lambda_.1} parent=43 // pred_fallthru
          _
      $region44: #{_lambda_.1} parent=5 // pred_fallthru
        _
      %p264 = scmp.le.s32.totalorder 1, %s17
      %p265 = scmp.lt.s32.totalorder %s17, 3
      %p266 = pnand %p264, %p265
      %p267 = pneg %p266
      // Predicated region
      $region49: #{_lambda_.1} parent=5 // pred_check
        _
      $region50: #{_lambda_.1} parent=5 // pred_check_branch
        %269 = sbr.rel (%p266) target = $region52
      $region51: #{_lambda_.1} parent=5 // pred_region
        %s270 = ssub.s32 %s17, 1
        %p271 = scmp.lt.s32.totalorder %s22, 1
        %s272 = scalar_select %p271, %s22, 1
        %s273 = smul.addr %s272, 8
        %s274 = smul.addr %s273, 8
        %s275 = scalar_lea.vmem %s0, %s274
        %p276 = pneg %p43
        %p277 = pneg %p40
        %p278 = pneg %p64
        %p279 = pneg %p61
        %p280 = pneg %p85
        %p281 = pneg %p82
        %p282 = pneg %p106
        %p283 = pneg %p103
        %p284 = pneg %p127
        %p285 = pneg %p124
        %p286 = pneg %p148
        %p287 = pneg %p145
        %p288 = pneg %p169
        %p289 = pneg %p166
        %p290 = pneg %p190
        %p291 = pneg %p187
        %p292 = pneg %p216
        %p293 = pneg %p213
        %s294 = sand.u32 %s203, 1
        %s295 = scalar_lea.sflag [#allocation3], %s294
        %s296 = sand.u32 %s203, 1
        %s297 = smul.addr %s296, 64
        %s298 = scalar_lea.vmem [#allocation2], %s297
        %p299 = scmp.lt.s32.totalorder %s22, 1
        %s300 = scalar_select %p299, %s22, 1
        %s301 = smul.addr %s300, 8
        %s302 = smul.addr %s301, 8
        %s303 = scalar_lea.vmem %s0, %s302
        %v305 = vld [vmem:[%s303] sm:$0xff]
        %v306 = vld [vmem:[%s303 + $0x8] sm:$0xff]
        %v307 = vld [vmem:[%s303 + $0x10] sm:$0xff]
        %v308 = vld [vmem:[%s303 + $0x18] sm:$0xff]
        %v309 = vld [vmem:[%s303 + $0x20] sm:$0xff]
        %v310 = vld [vmem:[%s303 + $0x28] sm:$0xff]
        %v311 = vld [vmem:[%s303 + $0x30] sm:$0xff]
        %v312 = vld [vmem:[%s303 + $0x38] sm:$0xff]
        %v313 = vpack.c.bf16 %v306, %v305
        %v314 = vpack.c.bf16 %v308, %v307
        %v315 = vpack.c.bf16 %v310, %v309
        %v316 = vpack.c.bf16 %v312, %v311
        %v317 = vld [vmem:[%s2] sm:$0xf]
        %v318 = vld [vmem:[%s2 + $0x4] sm:$0xf]
        %v319 = vld [vmem:[%s2 + $0x8] sm:$0xf]
        %v320 = vld [vmem:[%s2 + $0xc] sm:$0xf]
        %v321 = vld [vmem:[%s2 + $0x10] sm:$0xf]
        %v322 = vld [vmem:[%s2 + $0x14] sm:$0xf]
        %v323 = vld [vmem:[%s2 + $0x18] sm:$0xf]
        %v324 = vld [vmem:[%s2 + $0x1c] sm:$0xf]
        %v325 = vld [vmem:[%s2 + $0x20] sm:$0xf]
        %v326 = vld [vmem:[%s2 + $0x24] sm:$0xf]
        %v327 = vld [vmem:[%s2 + $0x28] sm:$0xf]
        %v328 = vld [vmem:[%s2 + $0x2c] sm:$0xf]
        %v329 = vld [vmem:[%s2 + $0x30] sm:$0xf]
        %v330 = vld [vmem:[%s2 + $0x34] sm:$0xf]
        %v331 = vld [vmem:[%s2 + $0x38] sm:$0xf]
        %v332 = vld [vmem:[%s2 + $0x3c] sm:$0xf]
        %v333 = vld [vmem:[%s3] sm:$0x1]
        %v335 = vlaneseq
        %v336 = vshrl.u32 %v335, 7
        %v337 = vsub.s32 0, %v336
        %v338 = vrot.slane %v333, %v337
        %v356 = vunpack.c.l.b16 %v317
        %v357 = vunpack.c.l.b16 %v318
        %v358 = vunpack.c.l.b16 %v319
        %v359 = vunpack.c.l.b16 %v320
        %v360 = vunpack.c.l.b16 %v321
        %v361 = vunpack.c.l.b16 %v322
        %v362 = vunpack.c.l.b16 %v323
        %v363 = vunpack.c.l.b16 %v324
        %v364 = vunpack.c.l.b16 %v325
        %v365 = vunpack.c.l.b16 %v326
        %v366 = vunpack.c.l.b16 %v327
        %v367 = vunpack.c.l.b16 %v328
        %v368 = vunpack.c.l.b16 %v329
        %v369 = vunpack.c.l.b16 %v330
        %v370 = vunpack.c.l.b16 %v331
        %v371 = vunpack.c.l.b16 %v332
        %v372 = vpack.c.b16 %v357, %v356
        %v373 = vpack.c.b16 %v359, %v358
        %v374 = vpack.c.b16 %v361, %v360
        %v375 = vpack.c.b16 %v363, %v362
        %v376 = vpack.c.b16 %v365, %v364
        %v377 = vpack.c.b16 %v367, %v366
        %v378 = vpack.c.b16 %v369, %v368
        %v379 = vpack.c.b16 %v371, %v370
        %388 = vmatprep.subr.bf16.mxu0 0
        %389 = vmatpush1.bf16.msra.mxu0 %v372
        %390 = vmatprep.subr.bf16.mxu0 0
        %391 = vmatpush1.bf16.msra.mxu0 %v373
        %392 = vmatprep.subr.bf16.mxu0 0
        %393 = vmatpush1.bf16.msra.mxu0 %v374
        %394 = vmatprep.subr.bf16.mxu0 0
        %395 = vmatpush1.bf16.msra.mxu0 %v375
        %396 = vmatprep.subr.bf16.mxu0 0
        %397 = vmatpush1.bf16.msra.mxu0 %v376
        %398 = vmatprep.subr.bf16.mxu0 0
        %399 = vmatpush1.bf16.msra.mxu0 %v377
        %400 = vmatprep.subr.bf16.mxu0 0
        %401 = vmatpush1.bf16.msra.mxu0 %v378
        %402 = vmatprep.subr.bf16.mxu0 0
        %403 = vmatpush1.bf16.msra.mxu0 %v379
        %404 = vmatprep.subr.bf16.mxu0 0
        %405 = vmatpush1.bf16.msra.mxu0 0
        %406 = vmatprep.subr.bf16.mxu0 0
        %407 = vmatpush1.bf16.msra.mxu0 0
        %408 = vmatprep.subr.bf16.mxu0 0
        %409 = vmatpush1.bf16.msra.mxu0 0
        %410 = vmatprep.subr.bf16.mxu0 0
        %411 = vmatpush1.bf16.msra.mxu0 0
        %412 = vmatprep.subr.bf16.mxu0 0
        %413 = vmatpush1.bf16.msra.mxu0 0
        %414 = vmatprep.subr.bf16.mxu0 0
        %415 = vmatpush1.bf16.msra.mxu0 0
        %416 = vmatprep.subr.bf16.mxu0 0
        %417 = vmatpush1.bf16.msra.mxu0 0
        %418 = vmatprep.subr.bf16.mxu0 0
        %419 = vmatpush1.bf16.msra.mxu0 0
        %420 = vmatprep.mubr.bf16.mxu0 0
        %421 = vmatmul.mubr.bf16.gmra.mrb[0].mxu0 %v313
        %v422 = vpop.f32.mrb[0].mxu0
        %v423 = vadd.f32 %v338, %v422
        %v424 = vpop.f32.mrb[0].mxu0
        %v425 = vpop.f32.mrb[0].mxu0
        %v426 = vadd.f32 %v338, %v425
        %v427 = vpop.f32.mrb[0].mxu0
        %428 = vmatprep.mubr.bf16.mxu0 0
        %429 = vmatmul.mubr.bf16.gmra.mrb[0].mxu0 %v314
        %v430 = vpop.f32.mrb[0].mxu0
        %v431 = vadd.f32 %v338, %v430
        %v432 = vpop.f32.mrb[0].mxu0
        %v433 = vpop.f32.mrb[0].mxu0
        %v434 = vadd.f32 %v338, %v433
        %v435 = vpop.f32.mrb[0].mxu0
        %436 = vmatprep.mubr.bf16.mxu0 0
        %437 = vmatmul.mubr.bf16.gmra.mrb[0].mxu0 %v315
        %v438 = vpop.f32.mrb[0].mxu0
        %v439 = vadd.f32 %v338, %v438
        %v440 = vpop.f32.mrb[0].mxu0
        %v441 = vpop.f32.mrb[0].mxu0
        %v442 = vadd.f32 %v338, %v441
        %v443 = vpop.f32.mrb[0].mxu0
        %444 = vmatprep.mubr.bf16.mxu0 0
        %445 = vmatmul.mubr.bf16.gmra.mrb[0].mxu0 %v316
        %v446 = vpop.f32.mrb[0].mxu0
        %v447 = vadd.f32 %v338, %v446
        %v448 = vpop.f32.mrb[0].mxu0
        %v449 = vpop.f32.mrb[0].mxu0
        %v450 = vadd.f32 %v338, %v449
        %v451 = vpop.f32.mrb[0].mxu0
        %452 = vdwg.mxu0
        %v453 = vmax.f32 %v423, 0.0
        %v454 = vmax.f32 %v426, 0.0
        %v455 = vmax.f32 %v431, 0.0
        %v456 = vmax.f32 %v434, 0.0
        %v457 = vmax.f32 %v439, 0.0
        %v458 = vmax.f32 %v442, 0.0
        %v459 = vmax.f32 %v447, 0.0
        %v460 = vmax.f32 %v450, 0.0
        %v461 = vld [vmem:[%s1] sm:$0xff]
        %v462 = vld [vmem:[%s1 + $0x8] sm:$0x1]
        %v463 = vlaneseq
        %v464 = vshrl.u32 %v463, 7
        %v465 = vsub.s32 4, %v464
        %v466 = vrot.slane %v461, %v465
        %v467 = vmul.f32 %v305, %v466
        %v468 = vmul.f32 %v306, %v466
        %v469 = vmul.f32 %v307, %v466
        %v470 = vmul.f32 %v308, %v466
        %v471 = vmul.f32 %v309, %v466
        %v472 = vmul.f32 %v310, %v466
        %v473 = vmul.f32 %v311, %v466
        %v474 = vmul.f32 %v312, %v466
        %v475 = vlaneseq
        %v476 = vshrl.u32 %v475, 7
        %v477 = vsub.s32 5, %v476
        %v478 = vrot.slane %v461, %v477
        %480 = vrot.lane.b32.xlu0 %v478, 32
        %v481 = vpop.permute.xlu0 %480
        %v483 = vmul.f32 %v305, %v481
        %v484 = vmul.f32 %v306, %v481
        %v485 = vmul.f32 %v307, %v481
        %v486 = vmul.f32 %v308, %v481
        %v487 = vmul.f32 %v309, %v481
        %v488 = vmul.f32 %v310, %v481
        %v489 = vmul.f32 %v311, %v481
        %v490 = vmul.f32 %v312, %v481
        %499 = vrot.lane.b32.xlu0 %v483, 96
        %v500 = vpop.permute.xlu0 %499
        %501 = vrot.lane.b32.xlu0 %v484, 96
        %v502 = vpop.permute.xlu0 %501
        %503 = vrot.lane.b32.xlu0 %v485, 96
        %v504 = vpop.permute.xlu0 %503
        %505 = vrot.lane.b32.xlu0 %v486, 96
        %v506 = vpop.permute.xlu0 %505
        %507 = vrot.lane.b32.xlu0 %v487, 96
        %v508 = vpop.permute.xlu0 %507
        %509 = vrot.lane.b32.xlu0 %v488, 96
        %v510 = vpop.permute.xlu0 %509
        %511 = vrot.lane.b32.xlu0 %v489, 96
        %v512 = vpop.permute.xlu0 %511
        %513 = vrot.lane.b32.xlu0 %v490, 96
        %v514 = vpop.permute.xlu0 %513
        %v523 = vadd.f32 %v467, %v500
        %v524 = vadd.f32 %v468, %v502
        %v525 = vadd.f32 %v469, %v504
        %v526 = vadd.f32 %v470, %v506
        %v527 = vadd.f32 %v471, %v508
        %v528 = vadd.f32 %v472, %v510
        %v529 = vadd.f32 %v473, %v512
        %v530 = vadd.f32 %v474, %v514
        %v531 = vlaneseq
        %v532 = vshrl.u32 %v531, 7
        %v533 = vsub.s32 7, %v532
        %v534 = vrot.slane %v461, %v533
        %536 = vrot.lane.b32.xlu0 %v534, 64
        %v537 = vpop.permute.xlu0 %536
        %v539 = vmul.f32 %v305, %v537
        %v540 = vmul.f32 %v306, %v537
        %v541 = vmul.f32 %v307, %v537
        %v542 = vmul.f32 %v308, %v537
        %v543 = vmul.f32 %v309, %v537
        %v544 = vmul.f32 %v310, %v537
        %v545 = vmul.f32 %v311, %v537
        %v546 = vmul.f32 %v312, %v537
        %555 = vrot.lane.b32.xlu0 %v539, 64
        %v556 = vpop.permute.xlu0 %555
        %557 = vrot.lane.b32.xlu0 %v540, 64
        %v558 = vpop.permute.xlu0 %557
        %559 = vrot.lane.b32.xlu0 %v541, 64
        %v560 = vpop.permute.xlu0 %559
        %561 = vrot.lane.b32.xlu0 %v542, 64
        %v562 = vpop.permute.xlu0 %561
        %563 = vrot.lane.b32.xlu0 %v543, 64
        %v564 = vpop.permute.xlu0 %563
        %565 = vrot.lane.b32.xlu0 %v544, 64
        %v566 = vpop.permute.xlu0 %565
        %567 = vrot.lane.b32.xlu0 %v545, 64
        %v568 = vpop.permute.xlu0 %567
        %569 = vrot.lane.b32.xlu0 %v546, 64
        %v570 = vpop.permute.xlu0 %569
        %v579 = vadd.f32 %v523, %v556
        %v580 = vadd.f32 %v524, %v558
        %v581 = vadd.f32 %v525, %v560
        %v582 = vadd.f32 %v526, %v562
        %v583 = vadd.f32 %v527, %v564
        %v584 = vadd.f32 %v528, %v566
        %v585 = vadd.f32 %v529, %v568
        %v586 = vadd.f32 %v530, %v570
        %v587 = vlaneseq
        %v588 = vshrl.u32 %v587, 7
        %v589 = vsub.s32 0, %v588
        %v590 = vrot.slane %v462, %v589
        %592 = vrot.lane.b32.xlu0 %v590, 96
        %v593 = vpop.permute.xlu0 %592
        %v595 = vmul.f32 %v305, %v593
        %v596 = vmul.f32 %v306, %v593
        %v597 = vmul.f32 %v307, %v593
        %v598 = vmul.f32 %v308, %v593
        %v599 = vmul.f32 %v309, %v593
        %v600 = vmul.f32 %v310, %v593
        %v601 = vmul.f32 %v311, %v593
        %v602 = vmul.f32 %v312, %v593
        %611 = vrot.lane.b32.xlu0 %v595, 32
        %v612 = vpop.permute.xlu0 %611
        %613 = vrot.lane.b32.xlu0 %v596, 32
        %v614 = vpop.permute.xlu0 %613
        %615 = vrot.lane.b32.xlu0 %v597, 32
        %v616 = vpop.permute.xlu0 %615
        %617 = vrot.lane.b32.xlu0 %v598, 32
        %v618 = vpop.permute.xlu0 %617
        %619 = vrot.lane.b32.xlu0 %v599, 32
        %v620 = vpop.permute.xlu0 %619
        %621 = vrot.lane.b32.xlu0 %v600, 32
        %v622 = vpop.permute.xlu0 %621
        %623 = vrot.lane.b32.xlu0 %v601, 32
        %v624 = vpop.permute.xlu0 %623
        %625 = vrot.lane.b32.xlu0 %v602, 32
        %v626 = vpop.permute.xlu0 %625
        %v635 = vadd.f32 %v579, %v612
        %v636 = vadd.f32 %v580, %v614
        %v637 = vadd.f32 %v581, %v616
        %v638 = vadd.f32 %v582, %v618
        %v639 = vadd.f32 %v583, %v620
        %v640 = vadd.f32 %v584, %v622
        %v641 = vadd.f32 %v585, %v624
        %v642 = vadd.f32 %v586, %v626
        %v643 = vlaneseq
        %v644 = vshrl.u32 %v643, 7
        %v645 = vsub.s32 3, %v644
        %v646 = vrot.slane %v461, %v645
        %648 = vrot.lane.b32.xlu0 %v646, 32
        %v649 = vpop.permute.xlu0 %648
        %v651 = vmul.f32 %v305, %v649
        %v652 = vmul.f32 %v306, %v649
        %v653 = vmul.f32 %v307, %v649
        %v654 = vmul.f32 %v308, %v649
        %v655 = vmul.f32 %v309, %v649
        %v656 = vmul.f32 %v310, %v649
        %v657 = vmul.f32 %v311, %v649
        %v658 = vmul.f32 %v312, %v649
        %v659 = vlaneseq
        %v660 = vshrl.u32 %v659, 7
        %v661 = vsub.s32 6, %v660
        %v662 = vrot.slane %v461, %v661
        %664 = vrot.lane.b32.xlu0 %v662, 96
        %v665 = vpop.permute.xlu0 %664
        %v667 = vmul.f32 %v305, %v665
        %v668 = vmul.f32 %v306, %v665
        %v669 = vmul.f32 %v307, %v665
        %v670 = vmul.f32 %v308, %v665
        %v671 = vmul.f32 %v309, %v665
        %v672 = vmul.f32 %v310, %v665
        %v673 = vmul.f32 %v311, %v665
        %v674 = vmul.f32 %v312, %v665
        %683 = vrot.lane.b32.xlu0 %v667, 64
        %v684 = vpop.permute.xlu0 %683
        %685 = vrot.lane.b32.xlu0 %v668, 64
        %v686 = vpop.permute.xlu0 %685
        %687 = vrot.lane.b32.xlu0 %v669, 64
        %v688 = vpop.permute.xlu0 %687
        %689 = vrot.lane.b32.xlu0 %v670, 64
        %v690 = vpop.permute.xlu0 %689
        %691 = vrot.lane.b32.xlu0 %v671, 64
        %v692 = vpop.permute.xlu0 %691
        %693 = vrot.lane.b32.xlu0 %v672, 64
        %v694 = vpop.permute.xlu0 %693
        %695 = vrot.lane.b32.xlu0 %v673, 64
        %v696 = vpop.permute.xlu0 %695
        %697 = vrot.lane.b32.xlu0 %v674, 64
        %v698 = vpop.permute.xlu0 %697
        %v707 = vadd.f32 %v651, %v684
        %v708 = vadd.f32 %v652, %v686
        %v709 = vadd.f32 %v653, %v688
        %v710 = vadd.f32 %v654, %v690
        %v711 = vadd.f32 %v655, %v692
        %v712 = vadd.f32 %v656, %v694
        %v713 = vadd.f32 %v657, %v696
        %v714 = vadd.f32 %v658, %v698
        %v715 = vlaneseq
        %v716 = vshrl.u32 %v715, 7
        %v717 = vsub.s32 1, %v716
        %v718 = vrot.slane %v461, %v717
        %720 = vrot.lane.b32.xlu0 %v718, 64
        %v721 = vpop.permute.xlu0 %720
        %v723 = vmul.f32 %v305, %v721
        %v724 = vmul.f32 %v306, %v721
        %v725 = vmul.f32 %v307, %v721
        %v726 = vmul.f32 %v308, %v721
        %v727 = vmul.f32 %v309, %v721
        %v728 = vmul.f32 %v310, %v721
        %v729 = vmul.f32 %v311, %v721
        %v730 = vlaneseq
        %v731 = vshrl.u32 %v730, 7
        %v732 = vsub.s32 2, %v731
        %v733 = vrot.slane %v461, %v732
        %735 = vrot.lane.b32.xlu0 %v733, 96
        %v736 = vpop.permute.xlu0 %735
        %v738 = vmul.f32 %v305, %v736
        %v739 = vmul.f32 %v306, %v736
        %v740 = vmul.f32 %v307, %v736
        %v741 = vmul.f32 %v308, %v736
        %v742 = vmul.f32 %v309, %v736
        %v743 = vmul.f32 %v310, %v736
        %v744 = vmul.f32 %v311, %v736
        %752 = vrot.lane.b32.xlu0 %v738, 96
        %v753 = vpop.permute.xlu0 %752
        %754 = vrot.lane.b32.xlu0 %v739, 96
        %v755 = vpop.permute.xlu0 %754
        %756 = vrot.lane.b32.xlu0 %v740, 96
        %v757 = vpop.permute.xlu0 %756
        %758 = vrot.lane.b32.xlu0 %v741, 96
        %v759 = vpop.permute.xlu0 %758
        %760 = vrot.lane.b32.xlu0 %v742, 96
        %v761 = vpop.permute.xlu0 %760
        %762 = vrot.lane.b32.xlu0 %v743, 96
        %v763 = vpop.permute.xlu0 %762
        %764 = vrot.lane.b32.xlu0 %v744, 96
        %v765 = vpop.permute.xlu0 %764
        %v773 = vadd.f32 %v723, %v753
        %v774 = vadd.f32 %v724, %v755
        %v775 = vadd.f32 %v725, %v757
        %v776 = vadd.f32 %v726, %v759
        %v777 = vadd.f32 %v727, %v761
        %v778 = vadd.f32 %v728, %v763
        %v779 = vadd.f32 %v729, %v765
        %v780 = vlaneseq
        %v781 = vshrl.u32 %v780, 7
        %v782 = vsub.s32 0, %v781
        %v783 = vrot.slane %v461, %v782
        %785 = vrot.lane.b32.xlu0 %v783, 96
        %v786 = vpop.permute.xlu0 %785
        %v788 = vmul.f32 %v305, %v786
        %v789 = vmul.f32 %v306, %v786
        %v790 = vmul.f32 %v307, %v786
        %v791 = vmul.f32 %v308, %v786
        %v792 = vmul.f32 %v309, %v786
        %v793 = vmul.f32 %v310, %v786
        %v794 = vmul.f32 %v311, %v786
        %v803 = vrot.slane %v707, 7
        %v804 = vrot.slane %v708, 7
        %v805 = vrot.slane %v709, 7
        %v806 = vrot.slane %v710, 7
        %v807 = vrot.slane %v711, 7
        %v808 = vrot.slane %v712, 7
        %v809 = vrot.slane %v713, 7
        %v810 = vrot.slane %v714, 7
        %811 = vrot.lane.b32.xlu0 %v803, 96
        %v812 = vpop.permute.xlu0 %811
        %813 = vrot.lane.b32.xlu0 %v804, 96
        %v814 = vpop.permute.xlu0 %813
        %815 = vrot.lane.b32.xlu0 %v805, 96
        %v816 = vpop.permute.xlu0 %815
        %817 = vrot.lane.b32.xlu0 %v806, 96
        %v818 = vpop.permute.xlu0 %817
        %819 = vrot.lane.b32.xlu0 %v807, 96
        %v820 = vpop.permute.xlu0 %819
        %821 = vrot.lane.b32.xlu0 %v808, 96
        %v822 = vpop.permute.xlu0 %821
        %823 = vrot.lane.b32.xlu0 %v809, 96
        %v824 = vpop.permute.xlu0 %823
        %825 = vrot.lane.b32.xlu0 %v810, 96
        %v826 = vpop.permute.xlu0 %825
        %vm835 = vcmask 1040384
        %v836 = vsel %vm835, 0.0, %v812
        %v837 = vsel %vm835, 0.0, %v814
        %v838 = vsel %vm835, 0.0, %v816
        %v839 = vsel %vm835, 0.0, %v818
        %v840 = vsel %vm835, 0.0, %v820
        %v841 = vsel %vm835, 0.0, %v822
        %v842 = vsel %vm835, 0.0, %v824
        %v843 = vsel %vm835, 0.0, %v826
        %v844 = vadd.f32 %v635, %v836
        %v845 = vadd.f32 %v636, %v837
        %v846 = vadd.f32 %v637, %v838
        %v847 = vadd.f32 %v638, %v839
        %v848 = vadd.f32 %v639, %v840
        %v849 = vadd.f32 %v640, %v841
        %v850 = vadd.f32 %v641, %v842
        %v851 = vadd.f32 %v642, %v843
        %v859 = vrot.slane %v788, 7
        %v860 = vrot.slane %v789, 7
        %v861 = vrot.slane %v790, 7
        %v862 = vrot.slane %v791, 7
        %v863 = vrot.slane %v792, 7
        %v864 = vrot.slane %v793, 7
        %v865 = vrot.slane %v794, 7
        %866 = vrot.lane.b32.xlu0 %v859, 32
        %v867 = vpop.permute.xlu0 %866
        %868 = vrot.lane.b32.xlu0 %v860, 32
        %v869 = vpop.permute.xlu0 %868
        %870 = vrot.lane.b32.xlu0 %v861, 32
        %v871 = vpop.permute.xlu0 %870
        %872 = vrot.lane.b32.xlu0 %v862, 32
        %v873 = vpop.permute.xlu0 %872
        %874 = vrot.lane.b32.xlu0 %v863, 32
        %v875 = vpop.permute.xlu0 %874
        %876 = vrot.lane.b32.xlu0 %v864, 32
        %v877 = vpop.permute.xlu0 %876
        %878 = vrot.lane.b32.xlu0 %v865, 32
        %v879 = vpop.permute.xlu0 %878
        %v887 = vsel %vm835, 0.0, %v867
        %v888 = vsel %vm835, 0.0, %v869
        %v889 = vsel %vm835, 0.0, %v871
        %v890 = vsel %vm835, 0.0, %v873
        %v891 = vsel %vm835, 0.0, %v875
        %v892 = vsel %vm835, 0.0, %v877
        %v893 = vsel %vm835, 0.0, %v879
        %901 = vrot.lane.b32.xlu0 %v887, 64
        %v902 = vpop.permute.xlu0 %901
        %903 = vrot.lane.b32.xlu0 %v888, 64
        %v904 = vpop.permute.xlu0 %903
        %905 = vrot.lane.b32.xlu0 %v889, 64
        %v906 = vpop.permute.xlu0 %905
        %907 = vrot.lane.b32.xlu0 %v890, 64
        %v908 = vpop.permute.xlu0 %907
        %909 = vrot.lane.b32.xlu0 %v891, 64
        %v910 = vpop.permute.xlu0 %909
        %911 = vrot.lane.b32.xlu0 %v892, 64
        %v912 = vpop.permute.xlu0 %911
        %913 = vrot.lane.b32.xlu0 %v893, 64
        %v914 = vpop.permute.xlu0 %913
        %v922 = vadd.f32 %v773, %v902
        %v923 = vadd.f32 %v774, %v904
        %v924 = vadd.f32 %v775, %v906
        %v925 = vadd.f32 %v776, %v908
        %v926 = vadd.f32 %v777, %v910
        %v927 = vadd.f32 %v778, %v912
        %v928 = vadd.f32 %v779, %v914
        %936 = vrot.lane.b32.xlu0 %v922, 64
        %v937 = vpop.permute.xlu0 %936
        %938 = vrot.lane.b32.xlu0 %v923, 64
        %v939 = vpop.permute.xlu0 %938
        %940 = vrot.lane.b32.xlu0 %v924, 64
        %v941 = vpop.permute.xlu0 %940
        %942 = vrot.lane.b32.xlu0 %v925, 64
        %v943 = vpop.permute.xlu0 %942
        %944 = vrot.lane.b32.xlu0 %v926, 64
        %v945 = vpop.permute.xlu0 %944
        %946 = vrot.lane.b32.xlu0 %v927, 64
        %v947 = vpop.permute.xlu0 %946
        %948 = vrot.lane.b32.xlu0 %v928, 64
        %v949 = vpop.permute.xlu0 %948
        %v957 = vadd.f32 %v844, 0.0
        %v958 = vadd.f32 %v845, %v937
        %v959 = vadd.f32 %v846, %v939
        %v960 = vadd.f32 %v847, %v941
        %v961 = vadd.f32 %v848, %v943
        %v962 = vadd.f32 %v849, %v945
        %v963 = vadd.f32 %v850, %v947
        %v964 = vadd.f32 %v851, %v949
        %v965 = vld [vmem:[%s4] sm:$0xff]
        %v966 = vld [vmem:[%s4 + $0x8] sm:$0x1]
        %v967 = vlaneseq
        %v968 = vshrl.u32 %v967, 7
        %v969 = vsub.s32 4, %v968
        %v970 = vrot.slane %v965, %v969
        %v971 = vmul.f32 %v453, %v970
        %v972 = vmul.f32 %v454, %v970
        %v973 = vmul.f32 %v455, %v970
        %v974 = vmul.f32 %v456, %v970
        %v975 = vmul.f32 %v457, %v970
        %v976 = vmul.f32 %v458, %v970
        %v977 = vmul.f32 %v459, %v970
        %v978 = vmul.f32 %v460, %v970
        %v979 = vlaneseq
        %v980 = vshrl.u32 %v979, 7
        %v981 = vsub.s32 5, %v980
        %v982 = vrot.slane %v965, %v981
        %984 = vrot.lane.b32.xlu0 %v982, 32
        %v985 = vpop.permute.xlu0 %984
        %v987 = vmul.f32 %v453, %v985
        %v988 = vmul.f32 %v454, %v985
        %v989 = vmul.f32 %v455, %v985
        %v990 = vmul.f32 %v456, %v985
        %v991 = vmul.f32 %v457, %v985
        %v992 = vmul.f32 %v458, %v985
        %v993 = vmul.f32 %v459, %v985
        %v994 = vmul.f32 %v460, %v985
        %1003 = vrot.lane.b32.xlu0 %v987, 96
        %v1004 = vpop.permute.xlu0 %1003
        %1005 = vrot.lane.b32.xlu0 %v988, 96
        %v1006 = vpop.permute.xlu0 %1005
        %1007 = vrot.lane.b32.xlu0 %v989, 96
        %v1008 = vpop.permute.xlu0 %1007
        %1009 = vrot.lane.b32.xlu0 %v990, 96
        %v1010 = vpop.permute.xlu0 %1009
        %1011 = vrot.lane.b32.xlu0 %v991, 96
        %v1012 = vpop.permute.xlu0 %1011
        %1013 = vrot.lane.b32.xlu0 %v992, 96
        %v1014 = vpop.permute.xlu0 %1013
        %1015 = vrot.lane.b32.xlu0 %v993, 96
        %v1016 = vpop.permute.xlu0 %1015
        %1017 = vrot.lane.b32.xlu0 %v994, 96
        %v1018 = vpop.permute.xlu0 %1017
        %v1027 = vadd.f32 %v971, %v1004
        %v1028 = vadd.f32 %v972, %v1006
        %v1029 = vadd.f32 %v973, %v1008
        %v1030 = vadd.f32 %v974, %v1010
        %v1031 = vadd.f32 %v975, %v1012
        %v1032 = vadd.f32 %v976, %v1014
        %v1033 = vadd.f32 %v977, %v1016
        %v1034 = vadd.f32 %v978, %v1018
        %v1035 = vlaneseq
        %v1036 = vshrl.u32 %v1035, 7
        %v1037 = vsub.s32 7, %v1036
        %v1038 = vrot.slane %v965, %v1037
        %1040 = vrot.lane.b32.xlu0 %v1038, 64
        %v1041 = vpop.permute.xlu0 %1040
        %v1043 = vmul.f32 %v453, %v1041
        %v1044 = vmul.f32 %v454, %v1041
        %v1045 = vmul.f32 %v455, %v1041
        %v1046 = vmul.f32 %v456, %v1041
        %v1047 = vmul.f32 %v457, %v1041
        %v1048 = vmul.f32 %v458, %v1041
        %v1049 = vmul.f32 %v459, %v1041
        %v1050 = vmul.f32 %v460, %v1041
        %1059 = vrot.lane.b32.xlu0 %v1043, 64
        %v1060 = vpop.permute.xlu0 %1059
        %1061 = vrot.lane.b32.xlu0 %v1044, 64
        %v1062 = vpop.permute.xlu0 %1061
        %1063 = vrot.lane.b32.xlu0 %v1045, 64
        %v1064 = vpop.permute.xlu0 %1063
        %1065 = vrot.lane.b32.xlu0 %v1046, 64
        %v1066 = vpop.permute.xlu0 %1065
        %1067 = vrot.lane.b32.xlu0 %v1047, 64
        %v1068 = vpop.permute.xlu0 %1067
        %1069 = vrot.lane.b32.xlu0 %v1048, 64
        %v1070 = vpop.permute.xlu0 %1069
        %1071 = vrot.lane.b32.xlu0 %v1049, 64
        %v1072 = vpop.permute.xlu0 %1071
        %1073 = vrot.lane.b32.xlu0 %v1050, 64
        %v1074 = vpop.permute.xlu0 %1073
        %v1083 = vadd.f32 %v1027, %v1060
        %v1084 = vadd.f32 %v1028, %v1062
        %v1085 = vadd.f32 %v1029, %v1064
        %v1086 = vadd.f32 %v1030, %v1066
        %v1087 = vadd.f32 %v1031, %v1068
        %v1088 = vadd.f32 %v1032, %v1070
        %v1089 = vadd.f32 %v1033, %v1072
        %v1090 = vadd.f32 %v1034, %v1074
        %v1091 = vlaneseq
        %v1092 = vshrl.u32 %v1091, 7
        %v1093 = vsub.s32 0, %v1092
        %v1094 = vrot.slane %v966, %v1093
        %1096 = vrot.lane.b32.xlu0 %v1094, 96
        %v1097 = vpop.permute.xlu0 %1096
        %v1099 = vmul.f32 %v453, %v1097
        %v1100 = vmul.f32 %v454, %v1097
        %v1101 = vmul.f32 %v455, %v1097
        %v1102 = vmul.f32 %v456, %v1097
        %v1103 = vmul.f32 %v457, %v1097
        %v1104 = vmul.f32 %v458, %v1097
        %v1105 = vmul.f32 %v459, %v1097
        %v1106 = vmul.f32 %v460, %v1097
        %1115 = vrot.lane.b32.xlu0 %v1099, 32
        %v1116 = vpop.permute.xlu0 %1115
        %1117 = vrot.lane.b32.xlu0 %v1100, 32
        %v1118 = vpop.permute.xlu0 %1117
        %1119 = vrot.lane.b32.xlu0 %v1101, 32
        %v1120 = vpop.permute.xlu0 %1119
        %1121 = vrot.lane.b32.xlu0 %v1102, 32
        %v1122 = vpop.permute.xlu0 %1121
        %1123 = vrot.lane.b32.xlu0 %v1103, 32
        %v1124 = vpop.permute.xlu0 %1123
        %1125 = vrot.lane.b32.xlu0 %v1104, 32
        %v1126 = vpop.permute.xlu0 %1125
        %1127 = vrot.lane.b32.xlu0 %v1105, 32
        %v1128 = vpop.permute.xlu0 %1127
        %1129 = vrot.lane.b32.xlu0 %v1106, 32
        %v1130 = vpop.permute.xlu0 %1129
        %v1139 = vadd.f32 %v1083, %v1116
        %v1140 = vadd.f32 %v1084, %v1118
        %v1141 = vadd.f32 %v1085, %v1120
        %v1142 = vadd.f32 %v1086, %v1122
        %v1143 = vadd.f32 %v1087, %v1124
        %v1144 = vadd.f32 %v1088, %v1126
        %v1145 = vadd.f32 %v1089, %v1128
        %v1146 = vadd.f32 %v1090, %v1130
        %v1147 = vlaneseq
        %v1148 = vshrl.u32 %v1147, 7
        %v1149 = vsub.s32 3, %v1148
        %v1150 = vrot.slane %v965, %v1149
        %1152 = vrot.lane.b32.xlu0 %v1150, 32
        %v1153 = vpop.permute.xlu0 %1152
        %v1155 = vmul.f32 %v453, %v1153
        %v1156 = vmul.f32 %v454, %v1153
        %v1157 = vmul.f32 %v455, %v1153
        %v1158 = vmul.f32 %v456, %v1153
        %v1159 = vmul.f32 %v457, %v1153
        %v1160 = vmul.f32 %v458, %v1153
        %v1161 = vmul.f32 %v459, %v1153
        %v1162 = vmul.f32 %v460, %v1153
        %v1163 = vlaneseq
        %v1164 = vshrl.u32 %v1163, 7
        %v1165 = vsub.s32 6, %v1164
        %v1166 = vrot.slane %v965, %v1165
        %1168 = vrot.lane.b32.xlu0 %v1166, 96
        %v1169 = vpop.permute.xlu0 %1168
        %v1171 = vmul.f32 %v453, %v1169
        %v1172 = vmul.f32 %v454, %v1169
        %v1173 = vmul.f32 %v455, %v1169
        %v1174 = vmul.f32 %v456, %v1169
        %v1175 = vmul.f32 %v457, %v1169
        %v1176 = vmul.f32 %v458, %v1169
        %v1177 = vmul.f32 %v459, %v1169
        %v1178 = vmul.f32 %v460, %v1169
        %1187 = vrot.lane.b32.xlu0 %v1171, 64
        %v1188 = vpop.permute.xlu0 %1187
        %1189 = vrot.lane.b32.xlu0 %v1172, 64
        %v1190 = vpop.permute.xlu0 %1189
        %1191 = vrot.lane.b32.xlu0 %v1173, 64
        %v1192 = vpop.permute.xlu0 %1191
        %1193 = vrot.lane.b32.xlu0 %v1174, 64
        %v1194 = vpop.permute.xlu0 %1193
        %1195 = vrot.lane.b32.xlu0 %v1175, 64
        %v1196 = vpop.permute.xlu0 %1195
        %1197 = vrot.lane.b32.xlu0 %v1176, 64
        %v1198 = vpop.permute.xlu0 %1197
        %1199 = vrot.lane.b32.xlu0 %v1177, 64
        %v1200 = vpop.permute.xlu0 %1199
        %1201 = vrot.lane.b32.xlu0 %v1178, 64
        %v1202 = vpop.permute.xlu0 %1201
        %v1211 = vadd.f32 %v1155, %v1188
        %v1212 = vadd.f32 %v1156, %v1190
        %v1213 = vadd.f32 %v1157, %v1192
        %v1214 = vadd.f32 %v1158, %v1194
        %v1215 = vadd.f32 %v1159, %v1196
        %v1216 = vadd.f32 %v1160, %v1198
        %v1217 = vadd.f32 %v1161, %v1200
        %v1218 = vadd.f32 %v1162, %v1202
        %v1219 = vlaneseq
        %v1220 = vshrl.u32 %v1219, 7
        %v1221 = vsub.s32 1, %v1220
        %v1222 = vrot.slane %v965, %v1221
        %1224 = vrot.lane.b32.xlu0 %v1222, 64
        %v1225 = vpop.permute.xlu0 %1224
        %v1227 = vmul.f32 %v453, %v1225
        %v1228 = vmul.f32 %v454, %v1225
        %v1229 = vmul.f32 %v455, %v1225
        %v1230 = vmul.f32 %v456, %v1225
        %v1231 = vmul.f32 %v457, %v1225
        %v1232 = vmul.f32 %v458, %v1225
        %v1233 = vmul.f32 %v459, %v1225
        %v1234 = vlaneseq
        %v1235 = vshrl.u32 %v1234, 7
        %v1236 = vsub.s32 2, %v1235
        %v1237 = vrot.slane %v965, %v1236
        %1239 = vrot.lane.b32.xlu0 %v1237, 96
        %v1240 = vpop.permute.xlu0 %1239
        %v1242 = vmul.f32 %v453, %v1240
        %v1243 = vmul.f32 %v454, %v1240
        %v1244 = vmul.f32 %v455, %v1240
        %v1245 = vmul.f32 %v456, %v1240
        %v1246 = vmul.f32 %v457, %v1240
        %v1247 = vmul.f32 %v458, %v1240
        %v1248 = vmul.f32 %v459, %v1240
        %1256 = vrot.lane.b32.xlu0 %v1242, 96
        %v1257 = vpop.permute.xlu0 %1256
        %1258 = vrot.lane.b32.xlu0 %v1243, 96
        %v1259 = vpop.permute.xlu0 %1258
        %1260 = vrot.lane.b32.xlu0 %v1244, 96
        %v1261 = vpop.permute.xlu0 %1260
        %1262 = vrot.lane.b32.xlu0 %v1245, 96
        %v1263 = vpop.permute.xlu0 %1262
        %1264 = vrot.lane.b32.xlu0 %v1246, 96
        %v1265 = vpop.permute.xlu0 %1264
        %1266 = vrot.lane.b32.xlu0 %v1247, 96
        %v1267 = vpop.permute.xlu0 %1266
        %1268 = vrot.lane.b32.xlu0 %v1248, 96
        %v1269 = vpop.permute.xlu0 %1268
        %v1277 = vadd.f32 %v1227, %v1257
        %v1278 = vadd.f32 %v1228, %v1259
        %v1279 = vadd.f32 %v1229, %v1261
        %v1280 = vadd.f32 %v1230, %v1263
        %v1281 = vadd.f32 %v1231, %v1265
        %v1282 = vadd.f32 %v1232, %v1267
        %v1283 = vadd.f32 %v1233, %v1269
        %v1284 = vlaneseq
        %v1285 = vshrl.u32 %v1284, 7
        %v1286 = vsub.s32 0, %v1285
        %v1287 = vrot.slane %v965, %v1286
        %1289 = vrot.lane.b32.xlu0 %v1287, 96
        %v1290 = vpop.permute.xlu0 %1289
        %v1292 = vmul.f32 %v453, %v1290
        %v1293 = vmul.f32 %v454, %v1290
        %v1294 = vmul.f32 %v455, %v1290
        %v1295 = vmul.f32 %v456, %v1290
        %v1296 = vmul.f32 %v457, %v1290
        %v1297 = vmul.f32 %v458, %v1290
        %v1298 = vmul.f32 %v459, %v1290
        %v1307 = vrot.slane %v1211, 7
        %v1308 = vrot.slane %v1212, 7
        %v1309 = vrot.slane %v1213, 7
        %v1310 = vrot.slane %v1214, 7
        %v1311 = vrot.slane %v1215, 7
        %v1312 = vrot.slane %v1216, 7
        %v1313 = vrot.slane %v1217, 7
        %v1314 = vrot.slane %v1218, 7
        %1315 = vrot.lane.b32.xlu0 %v1307, 96
        %v1316 = vpop.permute.xlu0 %1315
        %1317 = vrot.lane.b32.xlu0 %v1308, 96
        %v1318 = vpop.permute.xlu0 %1317
        %1319 = vrot.lane.b32.xlu0 %v1309, 96
        %v1320 = vpop.permute.xlu0 %1319
        %1321 = vrot.lane.b32.xlu0 %v1310, 96
        %v1322 = vpop.permute.xlu0 %1321
        %1323 = vrot.lane.b32.xlu0 %v1311, 96
        %v1324 = vpop.permute.xlu0 %1323
        %1325 = vrot.lane.b32.xlu0 %v1312, 96
        %v1326 = vpop.permute.xlu0 %1325
        %1327 = vrot.lane.b32.xlu0 %v1313, 96
        %v1328 = vpop.permute.xlu0 %1327
        %1329 = vrot.lane.b32.xlu0 %v1314, 96
        %v1330 = vpop.permute.xlu0 %1329
        %v1339 = vsel %vm835, 0.0, %v1316
        %v1340 = vsel %vm835, 0.0, %v1318
        %v1341 = vsel %vm835, 0.0, %v1320
        %v1342 = vsel %vm835, 0.0, %v1322
        %v1343 = vsel %vm835, 0.0, %v1324
        %v1344 = vsel %vm835, 0.0, %v1326
        %v1345 = vsel %vm835, 0.0, %v1328
        %v1346 = vsel %vm835, 0.0, %v1330
        %v1347 = vadd.f32 %v1139, %v1339
        %v1348 = vadd.f32 %v1140, %v1340
        %v1349 = vadd.f32 %v1141, %v1341
        %v1350 = vadd.f32 %v1142, %v1342
        %v1351 = vadd.f32 %v1143, %v1343
        %v1352 = vadd.f32 %v1144, %v1344
        %v1353 = vadd.f32 %v1145, %v1345
        %v1354 = vadd.f32 %v1146, %v1346
        %v1362 = vrot.slane %v1292, 7
        %v1363 = vrot.slane %v1293, 7
        %v1364 = vrot.slane %v1294, 7
        %v1365 = vrot.slane %v1295, 7
        %v1366 = vrot.slane %v1296, 7
        %v1367 = vrot.slane %v1297, 7
        %v1368 = vrot.slane %v1298, 7
        %1369 = vrot.lane.b32.xlu0 %v1362, 32
        %v1370 = vpop.permute.xlu0 %1369
        %1371 = vrot.lane.b32.xlu0 %v1363, 32
        %v1372 = vpop.permute.xlu0 %1371
        %1373 = vrot.lane.b32.xlu0 %v1364, 32
        %v1374 = vpop.permute.xlu0 %1373
        %1375 = vrot.lane.b32.xlu0 %v1365, 32
        %v1376 = vpop.permute.xlu0 %1375
        %1377 = vrot.lane.b32.xlu0 %v1366, 32
        %v1378 = vpop.permute.xlu0 %1377
        %1379 = vrot.lane.b32.xlu0 %v1367, 32
        %v1380 = vpop.permute.xlu0 %1379
        %1381 = vrot.lane.b32.xlu0 %v1368, 32
        %v1382 = vpop.permute.xlu0 %1381
        %v1390 = vsel %vm835, 0.0, %v1370
        %v1391 = vsel %vm835, 0.0, %v1372
        %v1392 = vsel %vm835, 0.0, %v1374
        %v1393 = vsel %vm835, 0.0, %v1376
        %v1394 = vsel %vm835, 0.0, %v1378
        %v1395 = vsel %vm835, 0.0, %v1380
        %v1396 = vsel %vm835, 0.0, %v1382
        %1404 = vrot.lane.b32.xlu0 %v1390, 64
        %v1405 = vpop.permute.xlu0 %1404
        %1406 = vrot.lane.b32.xlu0 %v1391, 64
        %v1407 = vpop.permute.xlu0 %1406
        %1408 = vrot.lane.b32.xlu0 %v1392, 64
        %v1409 = vpop.permute.xlu0 %1408
        %1410 = vrot.lane.b32.xlu0 %v1393, 64
        %v1411 = vpop.permute.xlu0 %1410
        %1412 = vrot.lane.b32.xlu0 %v1394, 64
        %v1413 = vpop.permute.xlu0 %1412
        %1414 = vrot.lane.b32.xlu0 %v1395, 64
        %v1415 = vpop.permute.xlu0 %1414
        %1416 = vrot.lane.b32.xlu0 %v1396, 64
        %v1417 = vpop.permute.xlu0 %1416
        %v1425 = vadd.f32 %v1277, %v1405
        %v1426 = vadd.f32 %v1278, %v1407
        %v1427 = vadd.f32 %v1279, %v1409
        %v1428 = vadd.f32 %v1280, %v1411
        %v1429 = vadd.f32 %v1281, %v1413
        %v1430 = vadd.f32 %v1282, %v1415
        %v1431 = vadd.f32 %v1283, %v1417
        %1439 = vrot.lane.b32.xlu0 %v1425, 64
        %v1440 = vpop.permute.xlu0 %1439
        %1441 = vrot.lane.b32.xlu0 %v1426, 64
        %v1442 = vpop.permute.xlu0 %1441
        %1443 = vrot.lane.b32.xlu0 %v1427, 64
        %v1444 = vpop.permute.xlu0 %1443
        %1445 = vrot.lane.b32.xlu0 %v1428, 64
        %v1446 = vpop.permute.xlu0 %1445
        %1447 = vrot.lane.b32.xlu0 %v1429, 64
        %v1448 = vpop.permute.xlu0 %1447
        %1449 = vrot.lane.b32.xlu0 %v1430, 64
        %v1450 = vpop.permute.xlu0 %1449
        %1451 = vrot.lane.b32.xlu0 %v1431, 64
        %v1452 = vpop.permute.xlu0 %1451
        %v1460 = vadd.f32 %v1347, 0.0
        %v1461 = vadd.f32 %v1348, %v1440
        %v1462 = vadd.f32 %v1349, %v1442
        %v1463 = vadd.f32 %v1350, %v1444
        %v1464 = vadd.f32 %v1351, %v1446
        %v1465 = vadd.f32 %v1352, %v1448
        %v1466 = vadd.f32 %v1353, %v1450
        %v1467 = vadd.f32 %v1354, %v1452
        %v1468 = vpack.c.bf16 %v958, %v957
        %v1469 = vpack.c.bf16 %v960, %v959
        %v1470 = vpack.c.bf16 %v962, %v961
        %v1471 = vpack.c.bf16 %v964, %v963
        %v1472 = vld [vmem:[%s5] sm:$0xf]
        %v1473 = vld [vmem:[%s5 + $0x4] sm:$0xf]
        %v1474 = vld [vmem:[%s5 + $0x8] sm:$0xf]
        %v1475 = vld [vmem:[%s5 + $0xc] sm:$0xf]
        %v1476 = vpack.c.bf16 %v1461, %v1460
        %v1477 = vpack.c.bf16 %v1463, %v1462
        %v1478 = vpack.c.bf16 %v1465, %v1464
        %v1479 = vpack.c.bf16 %v1467, %v1466
        %v1480 = vld [vmem:[%s6] sm:$0xf]
        %v1481 = vld [vmem:[%s6 + $0x4] sm:$0xf]
        %v1482 = vld [vmem:[%s6 + $0x8] sm:$0xf]
        %v1483 = vld [vmem:[%s6 + $0xc] sm:$0xf]
        %v1488 = vunpack.c.l.b16 %v1480
        %v1489 = vunpack.c.l.b16 %v1481
        %v1490 = vunpack.c.l.b16 %v1482
        %v1491 = vunpack.c.l.b16 %v1483
        %v1492 = vpack.c.b16 %v1489, %v1488
        %v1493 = vpack.c.b16 %v1491, %v1490
        %vm1496 = vcmask 261120
        %v1498 = vsel %vm1496, %v1476, 0
        %v1501 = vsel %vm1496, %v1477, 0
        %v1504 = vsel %vm1496, %v1478, 0
        %v1507 = vsel %vm1496, %v1479, 0
        %1509 = vmatprep.subr.bf16.mxu0 0
        %1510 = vmatpush1.bf16.msra.mxu0 %v1492
        %1511 = vmatprep.subr.bf16.mxu0 0
        %1512 = vmatpush1.bf16.msra.mxu0 %v1493
        %1513 = vmatprep.subr.bf16.mxu0 0
        %1514 = vmatpush1.bf16.msra.mxu0 0
        %1515 = vmatprep.subr.bf16.mxu0 0
        %1516 = vmatpush1.bf16.msra.mxu0 0
        %1517 = vmatprep.subr.bf16.mxu0 0
        %1518 = vmatpush1.bf16.msra.mxu0 0
        %1519 = vmatprep.subr.bf16.mxu0 0
        %1520 = vmatpush1.bf16.msra.mxu0 0
        %1521 = vmatprep.subr.bf16.mxu0 0
        %1522 = vmatpush1.bf16.msra.mxu0 0
        %1523 = vmatprep.subr.bf16.mxu0 0
        %1524 = vmatpush1.bf16.msra.mxu0 0
        %1525 = vmatprep.subr.bf16.mxu0 0
        %1526 = vmatpush1.bf16.msra.mxu0 0
        %1527 = vmatprep.subr.bf16.mxu0 0
        %1528 = vmatpush1.bf16.msra.mxu0 0
        %1529 = vmatprep.subr.bf16.mxu0 0
        %1530 = vmatpush1.bf16.msra.mxu0 0
        %1531 = vmatprep.subr.bf16.mxu0 0
        %1532 = vmatpush1.bf16.msra.mxu0 0
        %1533 = vmatprep.subr.bf16.mxu0 0
        %1534 = vmatpush1.bf16.msra.mxu0 0
        %1535 = vmatprep.subr.bf16.mxu0 0
        %1536 = vmatpush1.bf16.msra.mxu0 0
        %1537 = vmatprep.subr.bf16.mxu0 0
        %1538 = vmatpush1.bf16.msra.mxu0 0
        %1539 = vmatprep.subr.bf16.mxu0 0
        %1540 = vmatpush1.bf16.msra.mxu0 0
        %1541 = vmatprep.mubr.bf16.mxu0 0
        %1542 = vmatmul.mubr.bf16.gmra.mrb[0].mxu0 %v1498
        %v1543 = vpop.f32.mrb[0].mxu0
        %v1544 = vadd.f32 0.0, %v1543
        %v1545 = vpop.f32.mrb[0].mxu0
        %v1546 = vpop.f32.mrb[0].mxu0
        %v1547 = vadd.f32 0.0, %v1546
        %v1548 = vpop.f32.mrb[0].mxu0
        %1549 = vmatprep.mubr.bf16.mxu0 0
        %1550 = vmatmul.mubr.bf16.gmra.mrb[0].mxu0 %v1501
        %v1551 = vpop.f32.mrb[0].mxu0
        %v1552 = vadd.f32 0.0, %v1551
        %v1553 = vpop.f32.mrb[0].mxu0
        %v1554 = vpop.f32.mrb[0].mxu0
        %v1555 = vadd.f32 0.0, %v1554
        %v1556 = vpop.f32.mrb[0].mxu0
        %1557 = vmatprep.mubr.bf16.mxu0 0
        %1558 = vmatmul.mubr.bf16.gmra.mrb[0].mxu0 %v1504
        %v1559 = vpop.f32.mrb[0].mxu0
        %v1560 = vadd.f32 0.0, %v1559
        %v1561 = vpop.f32.mrb[0].mxu0
        %v1562 = vpop.f32.mrb[0].mxu0
        %v1563 = vadd.f32 0.0, %v1562
        %v1564 = vpop.f32.mrb[0].mxu0
        %1565 = vmatprep.mubr.bf16.mxu0 0
        %1566 = vmatmul.mubr.bf16.gmra.mrb[0].mxu0 %v1507
        %v1567 = vpop.f32.mrb[0].mxu0
        %v1568 = vadd.f32 0.0, %v1567
        %v1569 = vpop.f32.mrb[0].mxu0
        %v1570 = vpop.f32.mrb[0].mxu0
        %v1571 = vadd.f32 0.0, %v1570
        %v1572 = vpop.f32.mrb[0].mxu0
        %1573 = vdwg.mxu0
        %v1578 = vunpack.c.l.b16 %v1472
        %v1579 = vunpack.c.l.b16 %v1473
        %v1580 = vunpack.c.l.b16 %v1474
        %v1581 = vunpack.c.l.b16 %v1475
        %v1582 = vpack.c.b16 %v1579, %v1578
        %v1583 = vpack.c.b16 %v1581, %v1580
        %v1587 = vsel %vm1496, %v1468, 0
        %v1590 = vsel %vm1496, %v1469, 0
        %v1593 = vsel %vm1496, %v1470, 0
        %v1596 = vsel %vm1496, %v1471, 0
        %1598 = vmatprep.subr.bf16.mxu0 0
        %1599 = vmatpush1.bf16.msra.mxu0 %v1582
        %1600 = vmatprep.subr.bf16.mxu0 0
        %1601 = vmatpush1.bf16.msra.mxu0 %v1583
        %1602 = vmatprep.subr.bf16.mxu0 0
        %1603 = vmatpush1.bf16.msra.mxu0 0
        %1604 = vmatprep.subr.bf16.mxu0 0
        %1605 = vmatpush1.bf16.msra.mxu0 0
        %1606 = vmatprep.subr.bf16.mxu0 0
        %1607 = vmatpush1.bf16.msra.mxu0 0
        %1608 = vmatprep.subr.bf16.mxu0 0
        %1609 = vmatpush1.bf16.msra.mxu0 0
        %1610 = vmatprep.subr.bf16.mxu0 0
        %1611 = vmatpush1.bf16.msra.mxu0 0
        %1612 = vmatprep.subr.bf16.mxu0 0
        %1613 = vmatpush1.bf16.msra.mxu0 0
        %1614 = vmatprep.subr.bf16.mxu0 0
        %1615 = vmatpush1.bf16.msra.mxu0 0
        %1616 = vmatprep.subr.bf16.mxu0 0
        %1617 = vmatpush1.bf16.msra.mxu0 0
        %1618 = vmatprep.subr.bf16.mxu0 0
        %1619 = vmatpush1.bf16.msra.mxu0 0
        %1620 = vmatprep.subr.bf16.mxu0 0
        %1621 = vmatpush1.bf16.msra.mxu0 0
        %1622 = vmatprep.subr.bf16.mxu0 0
        %1623 = vmatpush1.bf16.msra.mxu0 0
        %1624 = vmatprep.subr.bf16.mxu0 0
        %1625 = vmatpush1.bf16.msra.mxu0 0
        %1626 = vmatprep.subr.bf16.mxu0 0
        %1627 = vmatpush1.bf16.msra.mxu0 0
        %1628 = vmatprep.subr.bf16.mxu0 0
        %1629 = vmatpush1.bf16.msra.mxu0 0
        %1630 = vmatprep.mubr.bf16.mxu0 0
        %1631 = vmatmul.mubr.bf16.gmra.mrb[0].mxu0 %v1587
        %v1632 = vpop.f32.mrb[0].mxu0
        %v1633 = vadd.f32 %v1544, %v1632
        %v1634 = vpop.f32.mrb[0].mxu0
        %v1635 = vpop.f32.mrb[0].mxu0
        %v1636 = vadd.f32 %v1547, %v1635
        %v1637 = vpop.f32.mrb[0].mxu0
        %1638 = vmatprep.mubr.bf16.mxu0 0
        %1639 = vmatmul.mubr.bf16.gmra.mrb[0].mxu0 %v1590
        %v1640 = vpop.f32.mrb[0].mxu0
        %v1641 = vadd.f32 %v1552, %v1640
        %v1642 = vpop.f32.mrb[0].mxu0
        %v1643 = vpop.f32.mrb[0].mxu0
        %v1644 = vadd.f32 %v1555, %v1643
        %v1645 = vpop.f32.mrb[0].mxu0
        %1646 = vmatprep.mubr.bf16.mxu0 0
        %1647 = vmatmul.mubr.bf16.gmra.mrb[0].mxu0 %v1593
        %v1648 = vpop.f32.mrb[0].mxu0
        %v1649 = vadd.f32 %v1560, %v1648
        %v1650 = vpop.f32.mrb[0].mxu0
        %v1651 = vpop.f32.mrb[0].mxu0
        %v1652 = vadd.f32 %v1563, %v1651
        %v1653 = vpop.f32.mrb[0].mxu0
        %1654 = vmatprep.mubr.bf16.mxu0 0
        %1655 = vmatmul.mubr.bf16.gmra.mrb[0].mxu0 %v1596
        %v1656 = vpop.f32.mrb[0].mxu0
        %v1657 = vadd.f32 %v1568, %v1656
        %v1658 = vpop.f32.mrb[0].mxu0
        %v1659 = vpop.f32.mrb[0].mxu0
        %v1660 = vadd.f32 %v1571, %v1659
        %v1661 = vpop.f32.mrb[0].mxu0
        %1662 = vdwg.mxu0
        %v1663 = vld [vmem:[%s7] sm:$0x1]
        %v1665 = vlaneseq
        %v1666 = vshrl.u32 %v1665, 7
        %v1667 = vsub.s32 0, %v1666
        %v1668 = vrot.slane %v1663, %v1667
        %v1670 = vadd.f32 %v1633, %v1668
        %v1671 = vadd.f32 %v1636, %v1668
        %v1672 = vadd.f32 %v1641, %v1668
        %v1673 = vadd.f32 %v1644, %v1668
        %v1674 = vadd.f32 %v1649, %v1668
        %v1675 = vadd.f32 %v1652, %v1668
        %v1676 = vadd.f32 %v1657, %v1668
        %v1677 = vadd.f32 %v1660, %v1668
        %v1678 = vmax.f32 %v1670, 0.0
        %v1679 = vmax.f32 %v1671, 0.0
        %v1680 = vmax.f32 %v1672, 0.0
        %v1681 = vmax.f32 %v1673, 0.0
        %v1682 = vmax.f32 %v1674, 0.0
        %v1683 = vmax.f32 %v1675, 0.0
        %v1684 = vmax.f32 %v1676, 0.0
        %v1685 = vmax.f32 %v1677, 0.0
        %vm1686 = vcmask 523264
        %1687 = vst.msk [vmem:[%s298] sm:$0xff] %vm1686, %v1678
        %1688 = vst.msk [vmem:[%s298 + $0x8] sm:$0xff] %vm1686, %v1679
        %1689 = vst.msk [vmem:[%s298 + $0x10] sm:$0xff] %vm1686, %v1680
        %1690 = vst.msk [vmem:[%s298 + $0x18] sm:$0xff] %vm1686, %v1681
        %1691 = vst.msk [vmem:[%s298 + $0x20] sm:$0xff] %vm1686, %v1682
        %1692 = vst.msk [vmem:[%s298 + $0x28] sm:$0xff] %vm1686, %v1683
        %1693 = vst.msk [vmem:[%s298 + $0x30] sm:$0xff] %vm1686, %v1684
        %1694 = vst.msk [vmem:[%s298 + $0x38] sm:$0xff] %vm1686, %v1685
        %s1695 = sand.u32 %s203, 1
        %s1696 = scalar_lea.sflag [#allocation3], %s1695
        %s1697 = sand.u32 %s203, 1
        %s1698 = smul.addr %s1697, 64
        %s1699 = scalar_lea.vmem [#allocation2], %s1698
        // Predicated region
        $region53: #{_lambda_.1} parent=51 // pred_check
          %p1700 = pneg %p213
        $region54: #{_lambda_.1} parent=51 // pred_check_branch
          %1702 = sbr.rel (%p1700) target = $region56
        $region55: #{_lambda_.1} parent=51 // pred_region
          %s1704 = ssub.s32 1024, 1024
          %1705 = vsyncadd %s1696, %s1704
          %s1706 = smul.addr %s22, 8
          %s1707 = smul.addr %s1706, 128
          %s1708 = scalar_lea.hbm %s8, %s1707
          %s1709 = sshll.u32 %s1699, 4
          %s1710 = int_to_ptr.vmem [resolvable:$true] %s1709
          %1715 = dma.vmem_to_hbm [thread:$0]  %s1710, 1024, %s1708, %s1696, 128, 128, 8
        $region56: #{_lambda_.1} parent=51 // pred_fallthru
          _
      $region52: #{_lambda_.1} parent=5 // pred_fallthru
        _
      %p1716 = scmp.le.s32.totalorder 2, %s17
      // Predicated region
      $region57: #{_lambda_.1} parent=5 // pred_check
        %p1717 = pneg %p1716
      $region58: #{_lambda_.1} parent=5 // pred_check_branch
        %1719 = sbr.rel (%p1717) target = $region60
      $region59: #{_lambda_.1} parent=5 // pred_region
        %s1720 = ssub.s32 %s17, 2
        // Predicated region
        $region61: #{_lambda_.1} parent=59 // pred_check
          %p1721 = pneg %p219
        $region62: #{_lambda_.1} parent=59 // pred_check_branch
          %1723 = sbr.rel (%p1721) target = $region64
        $region63: #{_lambda_.1} parent=59 // pred_region
          %s1724 = sand.u32 %s204, 1
          %s1725 = scalar_lea.sflag [#allocation3], %s1724
          %s1726 = sand.u32 %s204, 1
          %s1727 = smul.addr %s1726, 64
          %s1728 = scalar_lea.vmem [#allocation2], %s1727
          %1729 = dma.done %s1725, 1024
        $region64: #{_lambda_.1} parent=59 // pred_fallthru
          _
      $region60: #{_lambda_.1} parent=5 // pred_fallthru
        _
    $region6: #{_lambda_.1} parent=1 // loop_footer
      %s21 = sadd.s32 1, %s17
    $region7: #{_lambda_.1} parent=1 // loop_footer_branch
      %16 = sbr.rel target = $region3
    $region8: #{_lambda_.1} parent=1 // loop_exit
      _
    %1730 = vsyncpa [#allocation3], 1
    %s1731 = scalar_lea.sflag [#allocation3], 1
    %1732 = vsyncpa %s1731, 1

</llo_original>
